<compile_context>
chip_gen: v7x
topology: tpu7x:2x2x1
jax: 0.10.0
libtpu: 0.0.40
codegen_flags: <defaults>
</compile_context>

<pallas_src>
import functools

import jax
import jax.numpy as jnp
from jax.experimental import pallas as pl
from jax.experimental.pallas import tpu as pltpu

TOKEN_LENGTH = 32                 # binary_len / vocab_size in the reference code
_LOGIT_IN_KERNEL_MIN_HIDDEN = 16  # below this, the 32-lane logit store is not worth it


def _round_up(a, b):
    return (a + b - 1) // b * b


def _cdiv(a, b):
    return -(-a // b)


@functools.lru_cache(maxsize=1)
def _vmem_capacity_bytes():
    """Per-TensorCore VMEM capacity; fall back to the smallest (v7x, 64 MiB)."""
    try:
        return int(pltpu.get_tpu_info().vmem_capacity_bytes)
    except Exception:
        return 64 << 20


def _pick_row_tile(n_rows, hidden):
    """Size the per-step row tile from the (double-buffered) f32 emb output tile,
    which dominates VMEM, using a generation-aware budget."""
    vmem_cap = _vmem_capacity_bytes()
    out_row_bytes = TOKEN_LENGTH * hidden * 4          # emb bytes per row (f32)
    budget = max(vmem_cap // 4, 8 << 20)               # for the 2x-buffered emb tile
    r = budget // (2 * out_row_bytes)
    r = min(r, 2048)                                   # diminishing returns past multi-MiB steps
    # Keep >= ~4 grid steps on large inputs (megacore split on v7x + pipeline
    # depth), but never shrink a step below ~256 rows for that reason.
    r = min(r, max(256, _round_up(_cdiv(n_rows, 4), 8)))
    r = min(r, _round_up(n_rows, 8))                   # don't over-pad tiny inputs
    r = max(8, (r // 8) * 8)                           # sublane-aligned
    return int(r)


def _binary_embed_kernel(x_ref, repw_ref, wsum_ref, emb_ref, logit_ref):
    # x_ref:     [R, 32]      binary input tile (0/1, any float dtype)
    # repw_ref:  [32, 32*H]   weight folded into repeat matrix: repw[j, k*H+h] = (j==k)*W[k,h]
    # wsum_ref:  [1, 32]      per-bit-position row sums, sum_h W[j, h]
    # emb_ref:   [R, 32*H]    lane-dense embeddings slab
    # logit_ref: [R, 32]
    amp = x_ref[...].astype(jnp.float32) * 2.0 - 1.0               # [R, 32], exactly +/-1
    # Single MXU pass straight into the output tile: emb[r, k*H+h] = amp[r,k]*W[k,h].
    # HIGHEST precision reconstructs the f32 weights exactly (amp is bf16-exact).
    emb_ref[...] = jnp.dot(
        amp, repw_ref[...],
        preferred_element_type=jnp.float32,
        precision=jax.lax.Precision.HIGHEST,
    )
    # sum_h(amp * W[j,h]) == amp * sum_h W[j,h]  -> no per-tile H reduction needed.
    logit_ref[...] = amp * wsum_ref[...]


def _binary_embed_kernel_emb_only(x_ref, repw_ref, emb_ref):
    amp = x_ref[...].astype(jnp.float32) * 2.0 - 1.0
    emb_ref[...] = jnp.dot(
        amp, repw_ref[...],
        preferred_element_type=jnp.float32,
        precision=jax.lax.Precision.HIGHEST,
    )


@functools.partial(jax.jit, static_argnames=("row_tile",))
def _binary_embedding_impl(x, weight, *, row_tile):
    batch, seq, bin_len = x.shape
    hidden = weight.shape[1]
    n = batch * seq

    # Keep x in a narrow/native dtype; the *2-1 + f32 cast happens in-kernel.
    if not jnp.issubdtype(x.dtype, jnp.floating):
        x = x.astype(jnp.bfloat16)     # exact for 0/1 values
    x_flat = x.reshape(n, bin_len)
    n_pad = _round_up(n, row_tile)
    if n_pad != n:
        x_flat = jnp.pad(x_flat, ((0, n_pad - n), (0, 0)))

    w = weight.astype(jnp.float32)
    # Constant operands (VMEM-resident, constant index_map, single-buffered).
    eye = jnp.eye(TOKEN_LENGTH, dtype=jnp.float32)
    rep_w = (eye[:, :, None] * w[None, :, :]).reshape(TOKEN_LENGTH, TOKEN_LENGTH * hidden)
    w_sum = jnp.sum(w, axis=1)[None, :]                                         # [1, 32]

    logit_in_kernel = hidden >= _LOGIT_IN_KERNEL_MIN_HIDDEN

    # VMEM accounting (generation aware): double-buffered x/out tiles + constants.
    vmem_cap = _vmem_capacity_bytes()
    emb_tile_b = row_tile * TOKEN_LENGTH * hidden * 4
    x_tile_b = row_tile * TOKEN_LENGTH * x_flat.dtype.itemsize
    logit_tile_b = row_tile * TOKEN_LENGTH * 4 if logit_in_kernel else 0
    const_b = TOKEN_LENGTH * TOKEN_LENGTH * hidden * 4 + TOKEN_LENGTH * 4
    vmem_needed = 2 * (emb_tile_b + x_tile_b + logit_tile_b) + 2 * const_b
    vmem_ceiling = max(vmem_cap - (16 << 20), 32 << 20)   # >=16 MiB physical headroom
    vmem_limit = int(min(max(vmem_needed + (8 << 20), 16 << 20), vmem_ceiling))

    grid = (n_pad // row_tile,)
    x_spec = pl.BlockSpec((row_tile, TOKEN_LENGTH), lambda i: (i, 0))
    repw_spec = pl.BlockSpec(
        (TOKEN_LENGTH, TOKEN_LENGTH * hidden), lambda i: (0, 0),
        pipeline_mode=pl.Buffered(1))
    wsum_spec = pl.BlockSpec(
        (1, TOKEN_LENGTH), lambda i: (0, 0),
        pipeline_mode=pl.Buffered(1))
    emb_spec = pl.BlockSpec((row_tile, TOKEN_LENGTH * hidden), lambda i: (i, 0))
    logit_spec = pl.BlockSpec((row_tile, TOKEN_LENGTH), lambda i: (i, 0))

    compiler_params = pltpu.CompilerParams(
        dimension_semantics=("parallel",),   # rows can shard across v7x's 2 TCs
        vmem_limit_bytes=vmem_limit,
    )

    if logit_in_kernel:
        emb_flat, logit_flat = pl.pallas_call(
            _binary_embed_kernel,
            out_shape=(
                jax.ShapeDtypeStruct((n_pad, TOKEN_LENGTH * hidden), jnp.float32),
                jax.ShapeDtypeStruct((n_pad, TOKEN_LENGTH), jnp.float32),
            ),
            grid_spec=pltpu.PrefetchScalarGridSpec(
                num_scalar_prefetch=0,
                grid=grid,
                in_specs=[x_spec, repw_spec, wsum_spec],
                out_specs=[emb_spec, logit_spec],
            ),
            compiler_params=compiler_params,
        )(x_flat, rep_w, w_sum)
        logit_flat = logit_flat[:n]
    else:
        emb_flat = pl.pallas_call(
            _binary_embed_kernel_emb_only,
            out_shape=jax.ShapeDtypeStruct((n_pad, TOKEN_LENGTH * hidden), jnp.float32),
            grid_spec=pltpu.PrefetchScalarGridSpec(
                num_scalar_prefetch=0,
                grid=grid,
                in_specs=[x_spec, repw_spec],
                out_specs=emb_spec,
            ),
            compiler_params=compiler_params,
        )(x_flat, rep_w)
        # Tiny (32-lane) output: cheaper as a fused XLA elementwise op at small H.
        amp = x_flat[:n].astype(jnp.float32) * 2.0 - 1.0
        logit_flat = amp * w_sum

    embeddings = emb_flat[:n].reshape(batch, seq, TOKEN_LENGTH, hidden)
    logit_prime = logit_flat.reshape(batch, seq, TOKEN_LENGTH, 1)
    return embeddings, logit_prime


def binary_embedding_layer(x, weight, *, row_tile=None):
    """
    x:      [batch, seq, 32] binary (0/1) values
    weight: [32, hidden]     embedding table (f32)
    returns (embeddings [batch, seq, 32, hidden], logit_prime [batch, seq, 32, 1])
    """
    batch, seq, bin_len = x.shape
    assert bin_len == TOKEN_LENGTH, f"expected binary length {TOKEN_LENGTH}, got {bin_len}"
    hidden = weight.shape[1]
    if row_tile is None:
        row_tile = _pick_row_tile(batch * seq, hidden)
    return _binary_embedding_impl(x, weight, row_tile=int(row_tile))


def _reference(x, weight):
    amp = x.astype(jnp.float32) * 2.0 - 1.0                  # [B, S, 32]
    emb = amp[..., None] * weight[None, None, :, :]          # [B, S, 32, H]
    logit = jnp.sum(emb, axis=-1, keepdims=True)             # [B, S, 32, 1]
    return emb, logit


if __name__ == "__main__":
    key = jax.random.PRNGKey(0)
    k_x, k_w, k_w2 = jax.random.split(key, 3)

    batch, seq, hidden = 2, 8, 32
    # Binary (0/1) input, shape [batch, seq, 32]
    x = jax.random.bernoulli(k_x, p=0.5, shape=(batch, seq, TOKEN_LENGTH)).astype(jnp.float32)
    # Deterministic "nn.Embedding(32, hidden)" weight
    weight = jax.random.normal(k_w, (TOKEN_LENGTH, hidden), dtype=jnp.float32)

    emb, logit = binary_embedding_layer(x, weight)
    jax.block_until_ready((emb, logit))

    emb_ref, logit_ref = _reference(x, weight)
    assert emb.shape == (batch, seq, TOKEN_LENGTH, hidden)
    assert logit.shape == (batch, seq, TOKEN_LENGTH, 1)
    assert jnp.allclose(emb, emb_ref, atol=1e-5, rtol=1e-5)
    assert jnp.allclose(logit, logit_ref, atol=1e-5, rtol=1e-5)

    # Also exercise the small-hidden path (logit computed outside the kernel).
    hidden_small = 8
    weight_small = jax.random.normal(k_w2, (TOKEN_LENGTH, hidden_small), dtype=jnp.float32)
    emb_s, logit_s = binary_embedding_layer(x, weight_small)
    jax.block_until_ready((emb_s, logit_s))
    emb_s_ref, logit_s_ref = _reference(x, weight_small)
    assert emb_s.shape == (batch, seq, TOKEN_LENGTH, hidden_small)
    assert logit_s.shape == (batch, seq, TOKEN_LENGTH, 1)
    assert jnp.allclose(emb_s, emb_s_ref, atol=1e-5, rtol=1e-5)
    assert jnp.allclose(logit_s, logit_s_ref, atol=1e-5, rtol=1e-5)

    print("KERNEL_OK")
</pallas_src>

<mosaic_0001>
module attributes {stable_mosaic.version = 11 : i64} {
  func.func @_binary_embed_kernel(%arg0: i32, %arg1: memref<16x32xf32, #tpu.memory_space<vmem>>, %arg2: memref<32x1024xf32, #tpu.memory_space<vmem>>, %arg3: memref<1x32xf32, #tpu.memory_space<vmem>>, %arg4: memref<16x1024xf32, #tpu.memory_space<vmem>>, %arg5: memref<16x32xf32, #tpu.memory_space<vmem>>) attributes {dimension_semantics = [#tpu.dimension_semantics<parallel>], iteration_bounds = array<i64: 1>, scalar_prefetch = 0 : i64, scratch_operands = 0 : i64, tpu.core_type = #tpu.core_type<tc>, window_params = [{transform_indices = @transform_0, window_bounds = array<i64: 16, 32>}, {pipeline_mode = #tpu.pipeline_mode<synchronous>, transform_indices = @transform_1, window_bounds = array<i64: 32, 1024>}, {pipeline_mode = #tpu.pipeline_mode<synchronous>, transform_indices = @transform_2, window_bounds = array<i64: 1, 32>}, {transform_indices = @transform_3, window_bounds = array<i64: 16, 1024>}, {transform_indices = @transform_4, window_bounds = array<i64: 16, 32>}]} {
    %c0 = arith.constant 0 : index
    %c0_0 = arith.constant 0 : index
    %0 = vector.load %arg1[%c0, %c0_0] : memref<16x32xf32, #tpu.memory_space<vmem>>, vector<16x32xf32>
    %cst = arith.constant 2.000000e+00 : f32
    %1 = vector.broadcast %cst : f32 to vector<16x32xf32>
    %2 = arith.mulf %0, %1 : vector<16x32xf32>
    %cst_1 = arith.constant 1.000000e+00 : f32
    %3 = vector.broadcast %cst_1 : f32 to vector<16x32xf32>
    %4 = arith.subf %2, %3 : vector<16x32xf32>
    %c0_2 = arith.constant 0 : index
    %c0_3 = arith.constant 0 : index
    %5 = vector.load %arg2[%c0_2, %c0_3] : memref<32x1024xf32, #tpu.memory_space<vmem>>, vector<32x1024xf32>
    %cst_4 = arith.constant dense<0.000000e+00> : vector<16x1024xf32>
    %6 = tpu.matmul %4, %5, %cst_4 {dimension_numbers = #tpu.dot_dimension_numbers<[1], [0], [0], [1], [0, 0, 1, 1], [], []>, precision = #tpu.contract_precision<fp32>} : vector<16x32xf32>, vector<32x1024xf32>, vector<16x1024xf32> -> vector<16x1024xf32>
    %c0_5 = arith.constant 0 : index
    %c0_6 = arith.constant 0 : index
    %7 = vector.load %arg4[%c0_5, %c0_6] : memref<16x1024xf32, #tpu.memory_space<vmem>>, vector<16x1024xf32>
    tpu.vector_store %arg4[%c0_5, %c0_6], %6 {strides = array<i32>} : memref<16x1024xf32, #tpu.memory_space<vmem>>, vector<16x1024xf32>,
    %c0_7 = arith.constant 0 : index
    %c0_8 = arith.constant 0 : index
    %8 = vector.load %arg3[%c0_7, %c0_8] : memref<1x32xf32, #tpu.memory_space<vmem>>, vector<1x32xf32>
    %9 = vector.broadcast %8 : vector<1x32xf32> to vector<16x32xf32>
    %10 = arith.mulf %4, %9 : vector<16x32xf32>
    %c0_9 = arith.constant 0 : index
    %c0_10 = arith.constant 0 : index
    %11 = vector.load %arg5[%c0_9, %c0_10] : memref<16x32xf32, #tpu.memory_space<vmem>>, vector<16x32xf32>
    tpu.vector_store %arg5[%c0_9, %c0_10], %10 {strides = array<i32>} : memref<16x32xf32, #tpu.memory_space<vmem>>, vector<16x32xf32>,
    return
  }
  func.func @transform_0(%arg0: i32) -> (i32, i32) {
    %c0_i32 = arith.constant 0 : i32
    %c0_i32_0 = arith.constant 0 : i32
    return %arg0, %c0_i32 : i32, i32
  }
  func.func @transform_1(%arg0: i32) -> (i32, i32) {
    %c0_i32 = arith.constant 0 : i32
    %c0_i32_0 = arith.constant 0 : i32
    %c0_i32_1 = arith.constant 0 : i32
    return %c0_i32, %c0_i32_0 : i32, i32
  }
  func.func @transform_2(%arg0: i32) -> (i32, i32) {
    %c0_i32 = arith.constant 0 : i32
    %c0_i32_0 = arith.constant 0 : i32
    %c0_i32_1 = arith.constant 0 : i32
    return %c0_i32, %c0_i32_0 : i32, i32
  }
  func.func @transform_3(%arg0: i32) -> (i32, i32) {
    %c0_i32 = arith.constant 0 : i32
    %c0_i32_0 = arith.constant 0 : i32
    return %arg0, %c0_i32 : i32, i32
  }
  func.func @transform_4(%arg0: i32) -> (i32, i32) {
    %c0_i32 = arith.constant 0 : i32
    %c0_i32_0 = arith.constant 0 : i32
    return %arg0, %c0_i32 : i32, i32
  }
}

</mosaic_0001>

<llo_original>
// kernel: _binary_embedding_impl.1
$region0: #{_binary_embedding_impl.1}
  #allocation0 [shape = 'u32[]', space=smem, size = 0x4, offset = 0x4, fixed_abs, tag = 'smem constant byte address 0x4 - core index']
  #allocation1 [shape = 'u32[144,128]{1,0:T(1,128)}', space=vmem, size = 0x12000, scoped, tag = 'internal scratch']
  %s0 = inlined_call_operand.vmem [shape: f32[16,32], index: 0, kind: input, shape index: {}]
  %s1 = inlined_call_operand.vmem [shape: f32[32,1024], index: 1, kind: input, shape index: {}]
  %s2 = inlined_call_operand.vmem [shape: f32[1,32], index: 2, kind: input, shape index: {}]
  %s3 = inlined_call_operand.vmem [shape: f32[16,1024], index: 3, kind: output, shape index: {0}]
  %s4 = inlined_call_operand.hbm [shape: f32[16,32], index: 4, kind: output, shape index: {1}]
  %5 = xla_tuple %s3, %s4
  %s6 = sld [smem:[#allocation0]]
  $region30: #{_binary_embedding_impl.1} parent=0
    _
  %s8 = ssub.s32 1, %s6
  %s9 = scalar_select 0, %s8, %s6
  $region1: #{_binary_embedding_impl.1} parent=0
    #allocation2 [shape = 'u8[8192]{0}', space=vmem, size = 0x2000, scoped, tag = 'output window, operand 1, single buffered']
    #allocation3 [shape = 's32[1]{0}', space=sflag, size = 0x4, scoped, tag = 'scoped memory for _binary_embedding_impl.1']
    %10 = vsyncpa [#allocation3], 0
    // Predicated region
    $region2: #{_binary_embedding_impl.1} parent=1 // pred_check
      _
    $region3: #{_binary_embedding_impl.1} parent=1 // pred_check_branch
      %12 = sbr.rel (0) target = $region5
    $region4: #{_binary_embedding_impl.1} parent=1 // pred_region
      _
    $region5: #{_binary_embedding_impl.1} parent=1 // pred_fallthru
      _
    // Predicated region
    $region6: #{_binary_embedding_impl.1} parent=1 // pred_check
      _
    $region7: #{_binary_embedding_impl.1} parent=1 // pred_check_branch
      %14 = sbr.rel (0) target = $region9
    $region8: #{_binary_embedding_impl.1} parent=1 // pred_region
      _
    $region9: #{_binary_embedding_impl.1} parent=1 // pred_fallthru
      _
    // Predicated region
    $region10: #{_binary_embedding_impl.1} parent=1 // pred_check
      _
    $region11: #{_binary_embedding_impl.1} parent=1 // pred_check_branch
      %16 = sbr.rel (0) target = $region13
    $region12: #{_binary_embedding_impl.1} parent=1 // pred_region
      _
    $region13: #{_binary_embedding_impl.1} parent=1 // pred_fallthru
      _
    %v17 = vld [vmem:[%s0] sm:$0xff]
    %v18 = vld [vmem:[%s0 + $0x8] sm:$0xff]
    %v19 = vmul.f32 %v17, 2.0
    %v20 = vmul.f32 %v18, 2.0
    %v21 = vsub.f32 %v19, 1.0
    %v22 = vsub.f32 %v20, 1.0
    %v23 = vld [vmem:[%s1] sm:$0xff]
    %v24 = vld [vmem:[%s1 + $0x8] sm:$0xff]
    %v25 = vld [vmem:[%s1 + $0x10] sm:$0xff]
    %v26 = vld [vmem:[%s1 + $0x18] sm:$0xff]
    %v27 = vld [vmem:[%s1 + $0x20] sm:$0xff]
    %v28 = vld [vmem:[%s1 + $0x28] sm:$0xff]
    %v29 = vld [vmem:[%s1 + $0x30] sm:$0xff]
    %v30 = vld [vmem:[%s1 + $0x38] sm:$0xff]
    %v31 = vld [vmem:[%s1 + $0x40] sm:$0xff]
    %v32 = vld [vmem:[%s1 + $0x48] sm:$0xff]
    %v33 = vld [vmem:[%s1 + $0x50] sm:$0xff]
    %v34 = vld [vmem:[%s1 + $0x58] sm:$0xff]
    %v35 = vld [vmem:[%s1 + $0x60] sm:$0xff]
    %v36 = vld [vmem:[%s1 + $0x68] sm:$0xff]
    %v37 = vld [vmem:[%s1 + $0x70] sm:$0xff]
    %v38 = vld [vmem:[%s1 + $0x78] sm:$0xff]
    %v39 = vld [vmem:[%s1 + $0x80] sm:$0xff]
    %v40 = vld [vmem:[%s1 + $0x88] sm:$0xff]
    %v41 = vld [vmem:[%s1 + $0x90] sm:$0xff]
    %v42 = vld [vmem:[%s1 + $0x98] sm:$0xff]
    %v43 = vld [vmem:[%s1 + $0xa0] sm:$0xff]
    %v44 = vld [vmem:[%s1 + $0xa8] sm:$0xff]
    %v45 = vld [vmem:[%s1 + $0xb0] sm:$0xff]
    %v46 = vld [vmem:[%s1 + $0xb8] sm:$0xff]
    %v47 = vld [vmem:[%s1 + $0xc0] sm:$0xff]
    %v48 = vld [vmem:[%s1 + $0xc8] sm:$0xff]
    %v49 = vld [vmem:[%s1 + $0xd0] sm:$0xff]
    %v50 = vld [vmem:[%s1 + $0xd8] sm:$0xff]
    %v51 = vld [vmem:[%s1 + $0xe0] sm:$0xff]
    %v52 = vld [vmem:[%s1 + $0xe8] sm:$0xff]
    %v53 = vld [vmem:[%s1 + $0xf0] sm:$0xff]
    %v54 = vld [vmem:[%s1 + $0xf8] sm:$0xff]
    %vm55 = vcmask 261120
    %v57 = vsel %vm55, %v21, 0
    %v60 = vsel %vm55, %v22, 0
    %v62 = vand.u32 %v24, 4294901760
    %63 = vmatprep.subr.mxu0 %v62
    %v64 = vand.u32 %v23, 4294901760
    %65 = vmatpush1.msra.mxu0 %v64
    %v66 = vand.u32 %v32, 4294901760
    %67 = vmatprep.subr.mxu0 %v66
    %v68 = vand.u32 %v31, 4294901760
    %69 = vmatpush1.msra.mxu0 %v68
    %v70 = vand.u32 %v40, 4294901760
    %71 = vmatprep.subr.mxu0 %v70
    %v72 = vand.u32 %v39, 4294901760
    %73 = vmatpush1.msra.mxu0 %v72
    %v74 = vand.u32 %v48, 4294901760
    %75 = vmatprep.subr.mxu0 %v74
    %v76 = vand.u32 %v47, 4294901760
    %77 = vmatpush1.msra.mxu0 %v76
    %78 = vmatprep.subr.mxu0 0.0
    %79 = vmatpush1.msra.mxu0 0.0
    %80 = vmatprep.subr.mxu0 0.0
    %81 = vmatpush1.msra.mxu0 0.0
    %82 = vmatprep.subr.mxu0 0.0
    %83 = vmatpush1.msra.mxu0 0.0
    %84 = vmatprep.subr.mxu0 0.0
    %85 = vmatpush1.msra.mxu0 0.0
    %86 = vmatprep.subr.mxu0 0.0
    %87 = vmatpush1.msra.mxu0 0.0
    %88 = vmatprep.subr.mxu0 0.0
    %89 = vmatpush1.msra.mxu0 0.0
    %90 = vmatprep.subr.mxu0 0.0
    %91 = vmatpush1.msra.mxu0 0.0
    %92 = vmatprep.subr.mxu0 0.0
    %93 = vmatpush1.msra.mxu0 0.0
    %94 = vmatprep.subr.mxu0 0.0
    %95 = vmatpush1.msra.mxu0 0.0
    %96 = vmatprep.subr.mxu0 0.0
    %97 = vmatpush1.msra.mxu0 0.0
    %98 = vmatprep.subr.mxu0 0.0
    %99 = vmatpush1.msra.mxu0 0.0
    %100 = vmatprep.subr.mxu0 0.0
    %101 = vmatpush1.msra.mxu0 0.0
    %102 = vmatprep.subr.mxu0 0.0
    %103 = vmatpush1.msra.mxu0 0.0
    %104 = vmatprep.subr.mxu0 0.0
    %105 = vmatpush1.msra.mxu0 0.0
    %106 = vmatprep.subr.mxu0 0.0
    %107 = vmatpush1.msra.mxu0 0.0
    %108 = vmatprep.subr.mxu0 0.0
    %109 = vmatpush1.msra.mxu0 0.0
    %110 = vmatprep.subr.mxu0 0.0
    %111 = vmatpush1.msra.mxu0 0.0
    %112 = vmatprep.subr.mxu0 0.0
    %113 = vmatpush1.msra.mxu0 0.0
    %114 = vmatprep.subr.mxu0 0.0
    %115 = vmatpush1.msra.mxu0 0.0
    %116 = vmatprep.subr.mxu0 0.0
    %117 = vmatpush1.msra.mxu0 0.0
    %118 = vmatprep.subr.mxu0 0.0
    %119 = vmatpush1.msra.mxu0 0.0
    %120 = vmatprep.subr.mxu0 0.0
    %121 = vmatpush1.msra.mxu0 0.0
    %122 = vmatprep.subr.mxu0 0.0
    %123 = vmatpush1.msra.mxu0 0.0
    %124 = vmatprep.subr.mxu0 0.0
    %125 = vmatpush1.msra.mxu0 0.0
    %126 = vmatprep.subr.mxu0 0.0
    %127 = vmatpush1.msra.mxu0 0.0
    %128 = vmatprep.subr.mxu0 0.0
    %129 = vmatpush1.msra.mxu0 0.0
    %130 = vmatprep.subr.mxu0 0.0
    %131 = vmatpush1.msra.mxu0 0.0
    %132 = vmatprep.subr.mxu0 0.0
    %133 = vmatpush1.msra.mxu0 0.0
    %134 = vmatprep.mubr.f32.mxu0 0.0
    %v135 = vand.u32 %v57, 4294901760
    %v136 = vsub.f32 %v57, %v135
    %v137 = vand.u32 %v136, 4294901760
    %v138 = vsub.f32 %v136, %v137
    %v139 = vand.u32 %v138, 4294901760
    %140 = vmatmul.mubr.f32.gmra.mrb[0].mxu0 %v139
    %v141 = vpop.f32.mrb[0].mxu0
    %v142 = vadd.f32 0.0, %v141
    %v143 = vpop.f32.mrb[0].mxu0
    %v144 = vadd.f32 0.0, %v143
    %145 = vmatprep.mubr.f32.mxu0 0.0
    %v146 = vand.u32 %v60, 4294901760
    %v147 = vsub.f32 %v60, %v146
    %v148 = vand.u32 %v147, 4294901760
    %v149 = vsub.f32 %v147, %v148
    %v150 = vand.u32 %v149, 4294901760
    %151 = vmatmul.mubr.f32.gmra.mrb[0].mxu0 %v150
    %v152 = vpop.f32.mrb[0].mxu0
    %v153 = vadd.f32 0.0, %v152
    %v154 = vpop.f32.mrb[0].mxu0
    %v155 = vadd.f32 0.0, %v154
    %156 = vdwg.mxu0
    %v157 = vand.u32 %v24, 4294901760
    %v158 = vsub.f32 %v24, %v157
    %v159 = vand.u32 %v158, 4294901760
    %v160 = vsub.f32 %v158, %v159
    %v161 = vand.u32 %v160, 4294901760
    %162 = vmatprep.subr.mxu0 %v161
    %v163 = vand.u32 %v23, 4294901760
    %v164 = vsub.f32 %v23, %v163
    %v165 = vand.u32 %v164, 4294901760
    %v166 = vsub.f32 %v164, %v165
    %v167 = vand.u32 %v166, 4294901760
    %168 = vmatpush1.msra.mxu0 %v167
    %v169 = vand.u32 %v32, 4294901760
    %v170 = vsub.f32 %v32, %v169
    %v171 = vand.u32 %v170, 4294901760
    %v172 = vsub.f32 %v170, %v171
    %v173 = vand.u32 %v172, 4294901760
    %174 = vmatprep.subr.mxu0 %v173
    %v175 = vand.u32 %v31, 4294901760
    %v176 = vsub.f32 %v31, %v175
    %v177 = vand.u32 %v176, 4294901760
    %v178 = vsub.f32 %v176, %v177
    %v179 = vand.u32 %v178, 4294901760
    %180 = vmatpush1.msra.mxu0 %v179
    %v181 = vand.u32 %v40, 4294901760
    %v182 = vsub.f32 %v40, %v181
    %v183 = vand.u32 %v182, 4294901760
    %v184 = vsub.f32 %v182, %v183
    %v185 = vand.u32 %v184, 4294901760
    %186 = vmatprep.subr.mxu0 %v185
    %v187 = vand.u32 %v39, 4294901760
    %v188 = vsub.f32 %v39, %v187
    %v189 = vand.u32 %v188, 4294901760
    %v190 = vsub.f32 %v188, %v189
    %v191 = vand.u32 %v190, 4294901760
    %192 = vmatpush1.msra.mxu0 %v191
    %v193 = vand.u32 %v48, 4294901760
    %v194 = vsub.f32 %v48, %v193
    %v195 = vand.u32 %v194, 4294901760
    %v196 = vsub.f32 %v194, %v195
    %v197 = vand.u32 %v196, 4294901760
    %198 = vmatprep.subr.mxu0 %v197
    %v199 = vand.u32 %v47, 4294901760
    %v200 = vsub.f32 %v47, %v199
    %v201 = vand.u32 %v200, 4294901760
    %v202 = vsub.f32 %v200, %v201
    %v203 = vand.u32 %v202, 4294901760
    %204 = vmatpush1.msra.mxu0 %v203
    %205 = vmatprep.subr.mxu0 0.0
    %206 = vmatpush1.msra.mxu0 0.0
    %207 = vmatprep.subr.mxu0 0.0
    %208 = vmatpush1.msra.mxu0 0.0
    %209 = vmatprep.subr.mxu0 0.0
    %210 = vmatpush1.msra.mxu0 0.0
    %211 = vmatprep.subr.mxu0 0.0
    %212 = vmatpush1.msra.mxu0 0.0
    %213 = vmatprep.subr.mxu0 0.0
    %214 = vmatpush1.msra.mxu0 0.0
    %215 = vmatprep.subr.mxu0 0.0
    %216 = vmatpush1.msra.mxu0 0.0
    %217 = vmatprep.subr.mxu0 0.0
    %218 = vmatpush1.msra.mxu0 0.0
    %219 = vmatprep.subr.mxu0 0.0
    %220 = vmatpush1.msra.mxu0 0.0
    %221 = vmatprep.subr.mxu0 0.0
    %222 = vmatpush1.msra.mxu0 0.0
    %223 = vmatprep.subr.mxu0 0.0
    %224 = vmatpush1.msra.mxu0 0.0
    %225 = vmatprep.subr.mxu0 0.0
    %226 = vmatpush1.msra.mxu0 0.0
    %227 = vmatprep.subr.mxu0 0.0
    %228 = vmatpush1.msra.mxu0 0.0
    %229 = vmatprep.subr.mxu0 0.0
    %230 = vmatpush1.msra.mxu0 0.0
    %231 = vmatprep.subr.mxu0 0.0
    %232 = vmatpush1.msra.mxu0 0.0
    %233 = vmatprep.subr.mxu0 0.0
    %234 = vmatpush1.msra.mxu0 0.0
    %235 = vmatprep.subr.mxu0 0.0
    %236 = vmatpush1.msra.mxu0 0.0
    %237 = vmatprep.subr.mxu0 0.0
    %238 = vmatpush1.msra.mxu0 0.0
    %239 = vmatprep.subr.mxu0 0.0
    %240 = vmatpush1.msra.mxu0 0.0
    %241 = vmatprep.subr.mxu0 0.0
    %242 = vmatpush1.msra.mxu0 0.0
    %243 = vmatprep.subr.mxu0 0.0
    %244 = vmatpush1.msra.mxu0 0.0
    %245 = vmatprep.subr.mxu0 0.0
    %246 = vmatpush1.msra.mxu0 0.0
    %247 = vmatprep.subr.mxu0 0.0
    %248 = vmatpush1.msra.mxu0 0.0
    %249 = vmatprep.subr.mxu0 0.0
    %250 = vmatpush1.msra.mxu0 0.0
    %251 = vmatprep.subr.mxu0 0.0
    %252 = vmatpush1.msra.mxu0 0.0
    %253 = vmatprep.subr.mxu0 0.0
    %254 = vmatpush1.msra.mxu0 0.0
    %255 = vmatprep.subr.mxu0 0.0
    %256 = vmatpush1.msra.mxu0 0.0
    %257 = vmatprep.subr.mxu0 0.0
    %258 = vmatpush1.msra.mxu0 0.0
    %259 = vmatprep.subr.mxu0 0.0
    %260 = vmatpush1.msra.mxu0 0.0
    %261 = vmatprep.mubr.f32.mxu0 0.0
    %v262 = vand.u32 %v57, 4294901760
    %263 = vmatmul.mubr.f32.gmra.mrb[0].mxu0 %v262
    %v264 = vpop.f32.mrb[0].mxu0
    %v265 = vadd.f32 %v142, %v264
    %v266 = vpop.f32.mrb[0].mxu0
    %v267 = vadd.f32 %v144, %v266
    %268 = vmatprep.mubr.f32.mxu0 0.0
    %v269 = vand.u32 %v60, 4294901760
    %270 = vmatmul.mubr.f32.gmra.mrb[0].mxu0 %v269
    %v271 = vpop.f32.mrb[0].mxu0
    %v272 = vadd.f32 %v153, %v271
    %v273 = vpop.f32.mrb[0].mxu0
    %v274 = vadd.f32 %v155, %v273
    %275 = vdwg.mxu0
    %v276 = vand.u32 %v24, 4294901760
    %v277 = vsub.f32 %v24, %v276
    %278 = vmatprep.subr.mxu0 %v277
    %v279 = vand.u32 %v23, 4294901760
    %v280 = vsub.f32 %v23, %v279
    %281 = vmatpush1.msra.mxu0 %v280
    %v282 = vand.u32 %v32, 4294901760
    %v283 = vsub.f32 %v32, %v282
    %284 = vmatprep.subr.mxu0 %v283
    %v285 = vand.u32 %v31, 4294901760
    %v286 = vsub.f32 %v31, %v285
    %287 = vmatpush1.msra.mxu0 %v286
    %v288 = vand.u32 %v40, 4294901760
    %v289 = vsub.f32 %v40, %v288
    %290 = vmatprep.subr.mxu0 %v289
    %v291 = vand.u32 %v39, 4294901760
    %v292 = vsub.f32 %v39, %v291
    %293 = vmatpush1.msra.mxu0 %v292
    %v294 = vand.u32 %v48, 4294901760
    %v295 = vsub.f32 %v48, %v294
    %296 = vmatprep.subr.mxu0 %v295
    %v297 = vand.u32 %v47, 4294901760
    %v298 = vsub.f32 %v47, %v297
    %299 = vmatpush1.msra.mxu0 %v298
    %300 = vmatprep.subr.mxu0 0.0
    %301 = vmatpush1.msra.mxu0 0.0
    %302 = vmatprep.subr.mxu0 0.0
    %303 = vmatpush1.msra.mxu0 0.0
    %304 = vmatprep.subr.mxu0 0.0
    %305 = vmatpush1.msra.mxu0 0.0
    %306 = vmatprep.subr.mxu0 0.0
    %307 = vmatpush1.msra.mxu0 0.0
    %308 = vmatprep.subr.mxu0 0.0
    %309 = vmatpush1.msra.mxu0 0.0
    %310 = vmatprep.subr.mxu0 0.0
    %311 = vmatpush1.msra.mxu0 0.0
    %312 = vmatprep.subr.mxu0 0.0
    %313 = vmatpush1.msra.mxu0 0.0
    %314 = vmatprep.subr.mxu0 0.0
    %315 = vmatpush1.msra.mxu0 0.0
    %316 = vmatprep.subr.mxu0 0.0
    %317 = vmatpush1.msra.mxu0 0.0
    %318 = vmatprep.subr.mxu0 0.0
    %319 = vmatpush1.msra.mxu0 0.0
    %320 = vmatprep.subr.mxu0 0.0
    %321 = vmatpush1.msra.mxu0 0.0
    %322 = vmatprep.subr.mxu0 0.0
    %323 = vmatpush1.msra.mxu0 0.0
    %324 = vmatprep.subr.mxu0 0.0
    %325 = vmatpush1.msra.mxu0 0.0
    %326 = vmatprep.subr.mxu0 0.0
    %327 = vmatpush1.msra.mxu0 0.0
    %328 = vmatprep.subr.mxu0 0.0
    %329 = vmatpush1.msra.mxu0 0.0
    %330 = vmatprep.subr.mxu0 0.0
    %331 = vmatpush1.msra.mxu0 0.0
    %332 = vmatprep.subr.mxu0 0.0
    %333 = vmatpush1.msra.mxu0 0.0
    %334 = vmatprep.subr.mxu0 0.0
    %335 = vmatpush1.msra.mxu0 0.0
    %336 = vmatprep.subr.mxu0 0.0
    %337 = vmatpush1.msra.mxu0 0.0
    %338 = vmatprep.subr.mxu0 0.0
    %339 = vmatpush1.msra.mxu0 0.0
    %340 = vmatprep.subr.mxu0 0.0
    %341 = vmatpush1.msra.mxu0 0.0
    %342 = vmatprep.subr.mxu0 0.0
    %343 = vmatpush1.msra.mxu0 0.0
    %344 = vmatprep.subr.mxu0 0.0
    %345 = vmatpush1.msra.mxu0 0.0
    %346 = vmatprep.subr.mxu0 0.0
    %347 = vmatpush1.msra.mxu0 0.0
    %348 = vmatprep.subr.mxu0 0.0
    %349 = vmatpush1.msra.mxu0 0.0
    %350 = vmatprep.subr.mxu0 0.0
    %351 = vmatpush1.msra.mxu0 0.0
    %352 = vmatprep.subr.mxu0 0.0
    %353 = vmatpush1.msra.mxu0 0.0
    %354 = vmatprep.subr.mxu0 0.0
    %355 = vmatpush1.msra.mxu0 0.0
    %356 = vmatprep.mubr.f32.mxu0 0.0
    %v357 = vand.u32 %v57, 4294901760
    %v358 = vsub.f32 %v57, %v357
    %359 = vmatmul.mubr.f32.gmra.mrb[0].mxu0 %v358
    %v360 = vpop.f32.mrb[0].mxu0
    %v361 = vadd.f32 %v265, %v360
    %v362 = vpop.f32.mrb[0].mxu0
    %v363 = vadd.f32 %v267, %v362
    %364 = vmatprep.mubr.f32.mxu0 0.0
    %v365 = vand.u32 %v60, 4294901760
    %v366 = vsub.f32 %v60, %v365
    %367 = vmatmul.mubr.f32.gmra.mrb[0].mxu0 %v366
    %v368 = vpop.f32.mrb[0].mxu0
    %v369 = vadd.f32 %v272, %v368
    %v370 = vpop.f32.mrb[0].mxu0
    %v371 = vadd.f32 %v274, %v370
    %372 = vdwg.mxu0
    %v373 = vand.u32 %v24, 4294901760
    %374 = vmatprep.subr.mxu0 %v373
    %v375 = vand.u32 %v23, 4294901760
    %376 = vmatpush1.msra.mxu0 %v375
    %v377 = vand.u32 %v32, 4294901760
    %378 = vmatprep.subr.mxu0 %v377
    %v379 = vand.u32 %v31, 4294901760
    %380 = vmatpush1.msra.mxu0 %v379
    %v381 = vand.u32 %v40, 4294901760
    %382 = vmatprep.subr.mxu0 %v381
    %v383 = vand.u32 %v39, 4294901760
    %384 = vmatpush1.msra.mxu0 %v383
    %v385 = vand.u32 %v48, 4294901760
    %386 = vmatprep.subr.mxu0 %v385
    %v387 = vand.u32 %v47, 4294901760
    %388 = vmatpush1.msra.mxu0 %v387
    %389 = vmatprep.subr.mxu0 0.0
    %390 = vmatpush1.msra.mxu0 0.0
    %391 = vmatprep.subr.mxu0 0.0
    %392 = vmatpush1.msra.mxu0 0.0
    %393 = vmatprep.subr.mxu0 0.0
    %394 = vmatpush1.msra.mxu0 0.0
    %395 = vmatprep.subr.mxu0 0.0
    %396 = vmatpush1.msra.mxu0 0.0
    %397 = vmatprep.subr.mxu0 0.0
    %398 = vmatpush1.msra.mxu0 0.0
    %399 = vmatprep.subr.mxu0 0.0
    %400 = vmatpush1.msra.mxu0 0.0
    %401 = vmatprep.subr.mxu0 0.0
    %402 = vmatpush1.msra.mxu0 0.0
    %403 = vmatprep.subr.mxu0 0.0
    %404 = vmatpush1.msra.mxu0 0.0
    %405 = vmatprep.subr.mxu0 0.0
    %406 = vmatpush1.msra.mxu0 0.0
    %407 = vmatprep.subr.mxu0 0.0
    %408 = vmatpush1.msra.mxu0 0.0
    %409 = vmatprep.subr.mxu0 0.0
    %410 = vmatpush1.msra.mxu0 0.0
    %411 = vmatprep.subr.mxu0 0.0
    %412 = vmatpush1.msra.mxu0 0.0
    %413 = vmatprep.subr.mxu0 0.0
    %414 = vmatpush1.msra.mxu0 0.0
    %415 = vmatprep.subr.mxu0 0.0
    %416 = vmatpush1.msra.mxu0 0.0
    %417 = vmatprep.subr.mxu0 0.0
    %418 = vmatpush1.msra.mxu0 0.0
    %419 = vmatprep.subr.mxu0 0.0
    %420 = vmatpush1.msra.mxu0 0.0
    %421 = vmatprep.subr.mxu0 0.0
    %422 = vmatpush1.msra.mxu0 0.0
    %423 = vmatprep.subr.mxu0 0.0
    %424 = vmatpush1.msra.mxu0 0.0
    %425 = vmatprep.subr.mxu0 0.0
    %426 = vmatpush1.msra.mxu0 0.0
    %427 = vmatprep.subr.mxu0 0.0
    %428 = vmatpush1.msra.mxu0 0.0
    %429 = vmatprep.subr.mxu0 0.0
    %430 = vmatpush1.msra.mxu0 0.0
    %431 = vmatprep.subr.mxu0 0.0
    %432 = vmatpush1.msra.mxu0 0.0
    %433 = vmatprep.subr.mxu0 0.0
    %434 = vmatpush1.msra.mxu0 0.0
    %435 = vmatprep.subr.mxu0 0.0
    %436 = vmatpush1.msra.mxu0 0.0
    %437 = vmatprep.subr.mxu0 0.0
    %438 = vmatpush1.msra.mxu0 0.0
    %439 = vmatprep.subr.mxu0 0.0
    %440 = vmatpush1.msra.mxu0 0.0
    %441 = vmatprep.subr.mxu0 0.0
    %442 = vmatpush1.msra.mxu0 0.0
    %443 = vmatprep.subr.mxu0 0.0
    %444 = vmatpush1.msra.mxu0 0.0
    %445 = vmatprep.mubr.f32.mxu0 0.0
    %v446 = vand.u32 %v57, 4294901760
    %v447 = vsub.f32 %v57, %v446
    %v448 = vand.u32 %v447, 4294901760
    %449 = vmatmul.mubr.f32.gmra.mrb[0].mxu0 %v448
    %v450 = vpop.f32.mrb[0].mxu0
    %v451 = vadd.f32 %v361, %v450
    %v452 = vpop.f32.mrb[0].mxu0
    %v453 = vadd.f32 %v363, %v452
    %454 = vmatprep.mubr.f32.mxu0 0.0
    %v455 = vand.u32 %v60, 4294901760
    %v456 = vsub.f32 %v60, %v455
    %v457 = vand.u32 %v456, 4294901760
    %458 = vmatmul.mubr.f32.gmra.mrb[0].mxu0 %v457
    %v459 = vpop.f32.mrb[0].mxu0
    %v460 = vadd.f32 %v369, %v459
    %v461 = vpop.f32.mrb[0].mxu0
    %v462 = vadd.f32 %v371, %v461
    %463 = vdwg.mxu0
    %v464 = vand.u32 %v24, 4294901760
    %v465 = vsub.f32 %v24, %v464
    %v466 = vand.u32 %v465, 4294901760
    %467 = vmatprep.subr.mxu0 %v466
    %v468 = vand.u32 %v23, 4294901760
    %v469 = vsub.f32 %v23, %v468
    %v470 = vand.u32 %v469, 4294901760
    %471 = vmatpush1.msra.mxu0 %v470
    %v472 = vand.u32 %v32, 4294901760
    %v473 = vsub.f32 %v32, %v472
    %v474 = vand.u32 %v473, 4294901760
    %475 = vmatprep.subr.mxu0 %v474
    %v476 = vand.u32 %v31, 4294901760
    %v477 = vsub.f32 %v31, %v476
    %v478 = vand.u32 %v477, 4294901760
    %479 = vmatpush1.msra.mxu0 %v478
    %v480 = vand.u32 %v40, 4294901760
    %v481 = vsub.f32 %v40, %v480
    %v482 = vand.u32 %v481, 4294901760
    %483 = vmatprep.subr.mxu0 %v482
    %v484 = vand.u32 %v39, 4294901760
    %v485 = vsub.f32 %v39, %v484
    %v486 = vand.u32 %v485, 4294901760
    %487 = vmatpush1.msra.mxu0 %v486
    %v488 = vand.u32 %v48, 4294901760
    %v489 = vsub.f32 %v48, %v488
    %v490 = vand.u32 %v489, 4294901760
    %491 = vmatprep.subr.mxu0 %v490
    %v492 = vand.u32 %v47, 4294901760
    %v493 = vsub.f32 %v47, %v492
    %v494 = vand.u32 %v493, 4294901760
    %495 = vmatpush1.msra.mxu0 %v494
    %496 = vmatprep.subr.mxu0 0.0
    %497 = vmatpush1.msra.mxu0 0.0
    %498 = vmatprep.subr.mxu0 0.0
    %499 = vmatpush1.msra.mxu0 0.0
    %500 = vmatprep.subr.mxu0 0.0
    %501 = vmatpush1.msra.mxu0 0.0
    %502 = vmatprep.subr.mxu0 0.0
    %503 = vmatpush1.msra.mxu0 0.0
    %504 = vmatprep.subr.mxu0 0.0
    %505 = vmatpush1.msra.mxu0 0.0
    %506 = vmatprep.subr.mxu0 0.0
    %507 = vmatpush1.msra.mxu0 0.0
    %508 = vmatprep.subr.mxu0 0.0
    %509 = vmatpush1.msra.mxu0 0.0
    %510 = vmatprep.subr.mxu0 0.0
    %511 = vmatpush1.msra.mxu0 0.0
    %512 = vmatprep.subr.mxu0 0.0
    %513 = vmatpush1.msra.mxu0 0.0
    %514 = vmatprep.subr.mxu0 0.0
    %515 = vmatpush1.msra.mxu0 0.0
    %516 = vmatprep.subr.mxu0 0.0
    %517 = vmatpush1.msra.mxu0 0.0
    %518 = vmatprep.subr.mxu0 0.0
    %519 = vmatpush1.msra.mxu0 0.0
    %520 = vmatprep.subr.mxu0 0.0
    %521 = vmatpush1.msra.mxu0 0.0
    %522 = vmatprep.subr.mxu0 0.0
    %523 = vmatpush1.msra.mxu0 0.0
    %524 = vmatprep.subr.mxu0 0.0
    %525 = vmatpush1.msra.mxu0 0.0
    %526 = vmatprep.subr.mxu0 0.0
    %527 = vmatpush1.msra.mxu0 0.0
    %528 = vmatprep.subr.mxu0 0.0
    %529 = vmatpush1.msra.mxu0 0.0
    %530 = vmatprep.subr.mxu0 0.0
    %531 = vmatpush1.msra.mxu0 0.0
    %532 = vmatprep.subr.mxu0 0.0
    %533 = vmatpush1.msra.mxu0 0.0
    %534 = vmatprep.subr.mxu0 0.0
    %535 = vmatpush1.msra.mxu0 0.0
    %536 = vmatprep.subr.mxu0 0.0
    %537 = vmatpush1.msra.mxu0 0.0
    %538 = vmatprep.subr.mxu0 0.0
    %539 = vmatpush1.msra.mxu0 0.0
    %540 = vmatprep.subr.mxu0 0.0
    %541 = vmatpush1.msra.mxu0 0.0
    %542 = vmatprep.subr.mxu0 0.0
    %543 = vmatpush1.msra.mxu0 0.0
    %544 = vmatprep.subr.mxu0 0.0
    %545 = vmatpush1.msra.mxu0 0.0
    %546 = vmatprep.subr.mxu0 0.0
    %547 = vmatpush1.msra.mxu0 0.0
    %548 = vmatprep.subr.mxu0 0.0
    %549 = vmatpush1.msra.mxu0 0.0
    %550 = vmatprep.subr.mxu0 0.0
    %551 = vmatpush1.msra.mxu0 0.0
    %552 = vmatprep.mubr.f32.mxu0 0.0
    %v553 = vand.u32 %v57, 4294901760
    %554 = vmatmul.mubr.f32.gmra.mrb[0].mxu0 %v553
    %v555 = vpop.f32.mrb[0].mxu0
    %v556 = vadd.f32 %v451, %v555
    %v557 = vpop.f32.mrb[0].mxu0
    %v558 = vadd.f32 %v453, %v557
    %559 = vmatprep.mubr.f32.mxu0 0.0
    %v560 = vand.u32 %v60, 4294901760
    %561 = vmatmul.mubr.f32.gmra.mrb[0].mxu0 %v560
    %v562 = vpop.f32.mrb[0].mxu0
    %v563 = vadd.f32 %v460, %v562
    %v564 = vpop.f32.mrb[0].mxu0
    %v565 = vadd.f32 %v462, %v564
    %566 = vdwg.mxu0
    %v567 = vand.u32 %v24, 4294901760
    %568 = vmatprep.subr.mxu0 %v567
    %v569 = vand.u32 %v23, 4294901760
    %570 = vmatpush1.msra.mxu0 %v569
    %v571 = vand.u32 %v32, 4294901760
    %572 = vmatprep.subr.mxu0 %v571
    %v573 = vand.u32 %v31, 4294901760
    %574 = vmatpush1.msra.mxu0 %v573
    %v575 = vand.u32 %v40, 4294901760
    %576 = vmatprep.subr.mxu0 %v575
    %v577 = vand.u32 %v39, 4294901760
    %578 = vmatpush1.msra.mxu0 %v577
    %v579 = vand.u32 %v48, 4294901760
    %580 = vmatprep.subr.mxu0 %v579
    %v581 = vand.u32 %v47, 4294901760
    %582 = vmatpush1.msra.mxu0 %v581
    %583 = vmatprep.subr.mxu0 0.0
    %584 = vmatpush1.msra.mxu0 0.0
    %585 = vmatprep.subr.mxu0 0.0
    %586 = vmatpush1.msra.mxu0 0.0
    %587 = vmatprep.subr.mxu0 0.0
    %588 = vmatpush1.msra.mxu0 0.0
    %589 = vmatprep.subr.mxu0 0.0
    %590 = vmatpush1.msra.mxu0 0.0
    %591 = vmatprep.subr.mxu0 0.0
    %592 = vmatpush1.msra.mxu0 0.0
    %593 = vmatprep.subr.mxu0 0.0
    %594 = vmatpush1.msra.mxu0 0.0
    %595 = vmatprep.subr.mxu0 0.0
    %596 = vmatpush1.msra.mxu0 0.0
    %597 = vmatprep.subr.mxu0 0.0
    %598 = vmatpush1.msra.mxu0 0.0
    %599 = vmatprep.subr.mxu0 0.0
    %600 = vmatpush1.msra.mxu0 0.0
    %601 = vmatprep.subr.mxu0 0.0
    %602 = vmatpush1.msra.mxu0 0.0
    %603 = vmatprep.subr.mxu0 0.0
    %604 = vmatpush1.msra.mxu0 0.0
    %605 = vmatprep.subr.mxu0 0.0
    %606 = vmatpush1.msra.mxu0 0.0
    %607 = vmatprep.subr.mxu0 0.0
    %608 = vmatpush1.msra.mxu0 0.0
    %609 = vmatprep.subr.mxu0 0.0
    %610 = vmatpush1.msra.mxu0 0.0
    %611 = vmatprep.subr.mxu0 0.0
    %612 = vmatpush1.msra.mxu0 0.0
    %613 = vmatprep.subr.mxu0 0.0
    %614 = vmatpush1.msra.mxu0 0.0
    %615 = vmatprep.subr.mxu0 0.0
    %616 = vmatpush1.msra.mxu0 0.0
    %617 = vmatprep.subr.mxu0 0.0
    %618 = vmatpush1.msra.mxu0 0.0
    %619 = vmatprep.subr.mxu0 0.0
    %620 = vmatpush1.msra.mxu0 0.0
    %621 = vmatprep.subr.mxu0 0.0
    %622 = vmatpush1.msra.mxu0 0.0
    %623 = vmatprep.subr.mxu0 0.0
    %624 = vmatpush1.msra.mxu0 0.0
    %625 = vmatprep.subr.mxu0 0.0
    %626 = vmatpush1.msra.mxu0 0.0
    %627 = vmatprep.subr.mxu0 0.0
    %628 = vmatpush1.msra.mxu0 0.0
    %629 = vmatprep.subr.mxu0 0.0
    %630 = vmatpush1.msra.mxu0 0.0
    %631 = vmatprep.subr.mxu0 0.0
    %632 = vmatpush1.msra.mxu0 0.0
    %633 = vmatprep.subr.mxu0 0.0
    %634 = vmatpush1.msra.mxu0 0.0
    %635 = vmatprep.subr.mxu0 0.0
    %636 = vmatpush1.msra.mxu0 0.0
    %637 = vmatprep.subr.mxu0 0.0
    %638 = vmatpush1.msra.mxu0 0.0
    %639 = vmatprep.mubr.f32.mxu0 0.0
    %v640 = vand.u32 %v57, 4294901760
    %641 = vmatmul.mubr.f32.gmra.mrb[0].mxu0 %v640
    %v642 = vpop.f32.mrb[0].mxu0
    %v643 = vadd.f32 %v556, %v642
    %v644 = vpop.f32.mrb[0].mxu0
    %v645 = vadd.f32 %v558, %v644
    %646 = vmatprep.mubr.f32.mxu0 0.0
    %v647 = vand.u32 %v60, 4294901760
    %648 = vmatmul.mubr.f32.gmra.mrb[0].mxu0 %v647
    %v649 = vpop.f32.mrb[0].mxu0
    %v650 = vadd.f32 %v563, %v649
    %v651 = vpop.f32.mrb[0].mxu0
    %v652 = vadd.f32 %v565, %v651
    %653 = vdwg.mxu0
    %v654 = vand.u32 %v26, 4294901760
    %655 = vmatprep.subr.mxu0 %v654
    %v656 = vand.u32 %v25, 4294901760
    %657 = vmatpush1.msra.mxu0 %v656
    %v658 = vand.u32 %v34, 4294901760
    %659 = vmatprep.subr.mxu0 %v658
    %v660 = vand.u32 %v33, 4294901760
    %661 = vmatpush1.msra.mxu0 %v660
    %v662 = vand.u32 %v42, 4294901760
    %663 = vmatprep.subr.mxu0 %v662
    %v664 = vand.u32 %v41, 4294901760
    %665 = vmatpush1.msra.mxu0 %v664
    %v666 = vand.u32 %v50, 4294901760
    %667 = vmatprep.subr.mxu0 %v666
    %v668 = vand.u32 %v49, 4294901760
    %669 = vmatpush1.msra.mxu0 %v668
    %670 = vmatprep.subr.mxu0 0.0
    %671 = vmatpush1.msra.mxu0 0.0
    %672 = vmatprep.subr.mxu0 0.0
    %673 = vmatpush1.msra.mxu0 0.0
    %674 = vmatprep.subr.mxu0 0.0
    %675 = vmatpush1.msra.mxu0 0.0
    %676 = vmatprep.subr.mxu0 0.0
    %677 = vmatpush1.msra.mxu0 0.0
    %678 = vmatprep.subr.mxu0 0.0
    %679 = vmatpush1.msra.mxu0 0.0
    %680 = vmatprep.subr.mxu0 0.0
    %681 = vmatpush1.msra.mxu0 0.0
    %682 = vmatprep.subr.mxu0 0.0
    %683 = vmatpush1.msra.mxu0 0.0
    %684 = vmatprep.subr.mxu0 0.0
    %685 = vmatpush1.msra.mxu0 0.0
    %686 = vmatprep.subr.mxu0 0.0
    %687 = vmatpush1.msra.mxu0 0.0
    %688 = vmatprep.subr.mxu0 0.0
    %689 = vmatpush1.msra.mxu0 0.0
    %690 = vmatprep.subr.mxu0 0.0
    %691 = vmatpush1.msra.mxu0 0.0
    %692 = vmatprep.subr.mxu0 0.0
    %693 = vmatpush1.msra.mxu0 0.0
    %694 = vmatprep.subr.mxu0 0.0
    %695 = vmatpush1.msra.mxu0 0.0
    %696 = vmatprep.subr.mxu0 0.0
    %697 = vmatpush1.msra.mxu0 0.0
    %698 = vmatprep.subr.mxu0 0.0
    %699 = vmatpush1.msra.mxu0 0.0
    %700 = vmatprep.subr.mxu0 0.0
    %701 = vmatpush1.msra.mxu0 0.0
    %702 = vmatprep.subr.mxu0 0.0
    %703 = vmatpush1.msra.mxu0 0.0
    %704 = vmatprep.subr.mxu0 0.0
    %705 = vmatpush1.msra.mxu0 0.0
    %706 = vmatprep.subr.mxu0 0.0
    %707 = vmatpush1.msra.mxu0 0.0
    %708 = vmatprep.subr.mxu0 0.0
    %709 = vmatpush1.msra.mxu0 0.0
    %710 = vmatprep.subr.mxu0 0.0
    %711 = vmatpush1.msra.mxu0 0.0
    %712 = vmatprep.subr.mxu0 0.0
    %713 = vmatpush1.msra.mxu0 0.0
    %714 = vmatprep.subr.mxu0 0.0
    %715 = vmatpush1.msra.mxu0 0.0
    %716 = vmatprep.subr.mxu0 0.0
    %717 = vmatpush1.msra.mxu0 0.0
    %718 = vmatprep.subr.mxu0 0.0
    %719 = vmatpush1.msra.mxu0 0.0
    %720 = vmatprep.subr.mxu0 0.0
    %721 = vmatpush1.msra.mxu0 0.0
    %722 = vmatprep.subr.mxu0 0.0
    %723 = vmatpush1.msra.mxu0 0.0
    %724 = vmatprep.subr.mxu0 0.0
    %725 = vmatpush1.msra.mxu0 0.0
    %726 = vmatprep.mubr.f32.mxu0 0.0
    %v727 = vand.u32 %v57, 4294901760
    %v728 = vsub.f32 %v57, %v727
    %v729 = vand.u32 %v728, 4294901760
    %v730 = vsub.f32 %v728, %v729
    %v731 = vand.u32 %v730, 4294901760
    %732 = vmatmul.mubr.f32.gmra.mrb[0].mxu0 %v731
    %v733 = vpop.f32.mrb[0].mxu0
    %v734 = vadd.f32 0.0, %v733
    %v735 = vpop.f32.mrb[0].mxu0
    %v736 = vadd.f32 0.0, %v735
    %737 = vmatprep.mubr.f32.mxu0 0.0
    %v738 = vand.u32 %v60, 4294901760
    %v739 = vsub.f32 %v60, %v738
    %v740 = vand.u32 %v739, 4294901760
    %v741 = vsub.f32 %v739, %v740
    %v742 = vand.u32 %v741, 4294901760
    %743 = vmatmul.mubr.f32.gmra.mrb[0].mxu0 %v742
    %v744 = vpop.f32.mrb[0].mxu0
    %v745 = vadd.f32 0.0, %v744
    %v746 = vpop.f32.mrb[0].mxu0
    %v747 = vadd.f32 0.0, %v746
    %748 = vdwg.mxu0
    %v749 = vand.u32 %v26, 4294901760
    %v750 = vsub.f32 %v26, %v749
    %v751 = vand.u32 %v750, 4294901760
    %v752 = vsub.f32 %v750, %v751
    %v753 = vand.u32 %v752, 4294901760
    %754 = vmatprep.subr.mxu0 %v753
    %v755 = vand.u32 %v25, 4294901760
    %v756 = vsub.f32 %v25, %v755
    %v757 = vand.u32 %v756, 4294901760
    %v758 = vsub.f32 %v756, %v757
    %v759 = vand.u32 %v758, 4294901760
    %760 = vmatpush1.msra.mxu0 %v759
    %v761 = vand.u32 %v34, 4294901760
    %v762 = vsub.f32 %v34, %v761
    %v763 = vand.u32 %v762, 4294901760
    %v764 = vsub.f32 %v762, %v763
    %v765 = vand.u32 %v764, 4294901760
    %766 = vmatprep.subr.mxu0 %v765
    %v767 = vand.u32 %v33, 4294901760
    %v768 = vsub.f32 %v33, %v767
    %v769 = vand.u32 %v768, 4294901760
    %v770 = vsub.f32 %v768, %v769
    %v771 = vand.u32 %v770, 4294901760
    %772 = vmatpush1.msra.mxu0 %v771
    %v773 = vand.u32 %v42, 4294901760
    %v774 = vsub.f32 %v42, %v773
    %v775 = vand.u32 %v774, 4294901760
    %v776 = vsub.f32 %v774, %v775
    %v777 = vand.u32 %v776, 4294901760
    %778 = vmatprep.subr.mxu0 %v777
    %v779 = vand.u32 %v41, 4294901760
    %v780 = vsub.f32 %v41, %v779
    %v781 = vand.u32 %v780, 4294901760
    %v782 = vsub.f32 %v780, %v781
    %v783 = vand.u32 %v782, 4294901760
    %784 = vmatpush1.msra.mxu0 %v783
    %v785 = vand.u32 %v50, 4294901760
    %v786 = vsub.f32 %v50, %v785
    %v787 = vand.u32 %v786, 4294901760
    %v788 = vsub.f32 %v786, %v787
    %v789 = vand.u32 %v788, 4294901760
    %790 = vmatprep.subr.mxu0 %v789
    %v791 = vand.u32 %v49, 4294901760
    %v792 = vsub.f32 %v49, %v791
    %v793 = vand.u32 %v792, 4294901760
    %v794 = vsub.f32 %v792, %v793
    %v795 = vand.u32 %v794, 4294901760
    %796 = vmatpush1.msra.mxu0 %v795
    %797 = vmatprep.subr.mxu0 0.0
    %798 = vmatpush1.msra.mxu0 0.0
    %799 = vmatprep.subr.mxu0 0.0
    %800 = vmatpush1.msra.mxu0 0.0
    %801 = vmatprep.subr.mxu0 0.0
    %802 = vmatpush1.msra.mxu0 0.0
    %803 = vmatprep.subr.mxu0 0.0
    %804 = vmatpush1.msra.mxu0 0.0
    %805 = vmatprep.subr.mxu0 0.0
    %806 = vmatpush1.msra.mxu0 0.0
    %807 = vmatprep.subr.mxu0 0.0
    %808 = vmatpush1.msra.mxu0 0.0
    %809 = vmatprep.subr.mxu0 0.0
    %810 = vmatpush1.msra.mxu0 0.0
    %811 = vmatprep.subr.mxu0 0.0
    %812 = vmatpush1.msra.mxu0 0.0
    %813 = vmatprep.subr.mxu0 0.0
    %814 = vmatpush1.msra.mxu0 0.0
    %815 = vmatprep.subr.mxu0 0.0
    %816 = vmatpush1.msra.mxu0 0.0
    %817 = vmatprep.subr.mxu0 0.0
    %818 = vmatpush1.msra.mxu0 0.0
    %819 = vmatprep.subr.mxu0 0.0
    %820 = vmatpush1.msra.mxu0 0.0
    %821 = vmatprep.subr.mxu0 0.0
    %822 = vmatpush1.msra.mxu0 0.0
    %823 = vmatprep.subr.mxu0 0.0
    %824 = vmatpush1.msra.mxu0 0.0
    %825 = vmatprep.subr.mxu0 0.0
    %826 = vmatpush1.msra.mxu0 0.0
    %827 = vmatprep.subr.mxu0 0.0
    %828 = vmatpush1.msra.mxu0 0.0
    %829 = vmatprep.subr.mxu0 0.0
    %830 = vmatpush1.msra.mxu0 0.0
    %831 = vmatprep.subr.mxu0 0.0
    %832 = vmatpush1.msra.mxu0 0.0
    %833 = vmatprep.subr.mxu0 0.0
    %834 = vmatpush1.msra.mxu0 0.0
    %835 = vmatprep.subr.mxu0 0.0
    %836 = vmatpush1.msra.mxu0 0.0
    %837 = vmatprep.subr.mxu0 0.0
    %838 = vmatpush1.msra.mxu0 0.0
    %839 = vmatprep.subr.mxu0 0.0
    %840 = vmatpush1.msra.mxu0 0.0
    %841 = vmatprep.subr.mxu0 0.0
    %842 = vmatpush1.msra.mxu0 0.0
    %843 = vmatprep.subr.mxu0 0.0
    %844 = vmatpush1.msra.mxu0 0.0
    %845 = vmatprep.subr.mxu0 0.0
    %846 = vmatpush1.msra.mxu0 0.0
    %847 = vmatprep.subr.mxu0 0.0
    %848 = vmatpush1.msra.mxu0 0.0
    %849 = vmatprep.subr.mxu0 0.0
    %850 = vmatpush1.msra.mxu0 0.0
    %851 = vmatprep.subr.mxu0 0.0
    %852 = vmatpush1.msra.mxu0 0.0
    %853 = vmatprep.mubr.f32.mxu0 0.0
    %v854 = vand.u32 %v57, 4294901760
    %855 = vmatmul.mubr.f32.gmra.mrb[0].mxu0 %v854
    %v856 = vpop.f32.mrb[0].mxu0
    %v857 = vadd.f32 %v734, %v856
    %v858 = vpop.f32.mrb[0].mxu0
    %v859 = vadd.f32 %v736, %v858
    %860 = vmatprep.mubr.f32.mxu0 0.0
    %v861 = vand.u32 %v60, 4294901760
    %862 = vmatmul.mubr.f32.gmra.mrb[0].mxu0 %v861
    %v863 = vpop.f32.mrb[0].mxu0
    %v864 = vadd.f32 %v745, %v863
    %v865 = vpop.f32.mrb[0].mxu0
    %v866 = vadd.f32 %v747, %v865
    %867 = vdwg.mxu0
    %v868 = vand.u32 %v26, 4294901760
    %v869 = vsub.f32 %v26, %v868
    %870 = vmatprep.subr.mxu0 %v869
    %v871 = vand.u32 %v25, 4294901760
    %v872 = vsub.f32 %v25, %v871
    %873 = vmatpush1.msra.mxu0 %v872
    %v874 = vand.u32 %v34, 4294901760
    %v875 = vsub.f32 %v34, %v874
    %876 = vmatprep.subr.mxu0 %v875
    %v877 = vand.u32 %v33, 4294901760
    %v878 = vsub.f32 %v33, %v877
    %879 = vmatpush1.msra.mxu0 %v878
    %v880 = vand.u32 %v42, 4294901760
    %v881 = vsub.f32 %v42, %v880
    %882 = vmatprep.subr.mxu0 %v881
    %v883 = vand.u32 %v41, 4294901760
    %v884 = vsub.f32 %v41, %v883
    %885 = vmatpush1.msra.mxu0 %v884
    %v886 = vand.u32 %v50, 4294901760
    %v887 = vsub.f32 %v50, %v886
    %888 = vmatprep.subr.mxu0 %v887
    %v889 = vand.u32 %v49, 4294901760
    %v890 = vsub.f32 %v49, %v889
    %891 = vmatpush1.msra.mxu0 %v890
    %892 = vmatprep.subr.mxu0 0.0
    %893 = vmatpush1.msra.mxu0 0.0
    %894 = vmatprep.subr.mxu0 0.0
    %895 = vmatpush1.msra.mxu0 0.0
    %896 = vmatprep.subr.mxu0 0.0
    %897 = vmatpush1.msra.mxu0 0.0
    %898 = vmatprep.subr.mxu0 0.0
    %899 = vmatpush1.msra.mxu0 0.0
    %900 = vmatprep.subr.mxu0 0.0
    %901 = vmatpush1.msra.mxu0 0.0
    %902 = vmatprep.subr.mxu0 0.0
    %903 = vmatpush1.msra.mxu0 0.0
    %904 = vmatprep.subr.mxu0 0.0
    %905 = vmatpush1.msra.mxu0 0.0
    %906 = vmatprep.subr.mxu0 0.0
    %907 = vmatpush1.msra.mxu0 0.0
    %908 = vmatprep.subr.mxu0 0.0
    %909 = vmatpush1.msra.mxu0 0.0
    %910 = vmatprep.subr.mxu0 0.0
    %911 = vmatpush1.msra.mxu0 0.0
    %912 = vmatprep.subr.mxu0 0.0
    %913 = vmatpush1.msra.mxu0 0.0
    %914 = vmatprep.subr.mxu0 0.0
    %915 = vmatpush1.msra.mxu0 0.0
    %916 = vmatprep.subr.mxu0 0.0
    %917 = vmatpush1.msra.mxu0 0.0
    %918 = vmatprep.subr.mxu0 0.0
    %919 = vmatpush1.msra.mxu0 0.0
    %920 = vmatprep.subr.mxu0 0.0
    %921 = vmatpush1.msra.mxu0 0.0
    %922 = vmatprep.subr.mxu0 0.0
    %923 = vmatpush1.msra.mxu0 0.0
    %924 = vmatprep.subr.mxu0 0.0
    %925 = vmatpush1.msra.mxu0 0.0
    %926 = vmatprep.subr.mxu0 0.0
    %927 = vmatpush1.msra.mxu0 0.0
    %928 = vmatprep.subr.mxu0 0.0
    %929 = vmatpush1.msra.mxu0 0.0
    %930 = vmatprep.subr.mxu0 0.0
    %931 = vmatpush1.msra.mxu0 0.0
    %932 = vmatprep.subr.mxu0 0.0
    %933 = vmatpush1.msra.mxu0 0.0
    %934 = vmatprep.subr.mxu0 0.0
    %935 = vmatpush1.msra.mxu0 0.0
    %936 = vmatprep.subr.mxu0 0.0
    %937 = vmatpush1.msra.mxu0 0.0
    %938 = vmatprep.subr.mxu0 0.0
    %939 = vmatpush1.msra.mxu0 0.0
    %940 = vmatprep.subr.mxu0 0.0
    %941 = vmatpush1.msra.mxu0 0.0
    %942 = vmatprep.subr.mxu0 0.0
    %943 = vmatpush1.msra.mxu0 0.0
    %944 = vmatprep.subr.mxu0 0.0
    %945 = vmatpush1.msra.mxu0 0.0
    %946 = vmatprep.subr.mxu0 0.0
    %947 = vmatpush1.msra.mxu0 0.0
    %948 = vmatprep.mubr.f32.mxu0 0.0
    %v949 = vand.u32 %v57, 4294901760
    %v950 = vsub.f32 %v57, %v949
    %951 = vmatmul.mubr.f32.gmra.mrb[0].mxu0 %v950
    %v952 = vpop.f32.mrb[0].mxu0
    %v953 = vadd.f32 %v857, %v952
    %v954 = vpop.f32.mrb[0].mxu0
    %v955 = vadd.f32 %v859, %v954
    %956 = vmatprep.mubr.f32.mxu0 0.0
    %v957 = vand.u32 %v60, 4294901760
    %v958 = vsub.f32 %v60, %v957
    %959 = vmatmul.mubr.f32.gmra.mrb[0].mxu0 %v958
    %v960 = vpop.f32.mrb[0].mxu0
    %v961 = vadd.f32 %v864, %v960
    %v962 = vpop.f32.mrb[0].mxu0
    %v963 = vadd.f32 %v866, %v962
    %964 = vdwg.mxu0
    %v965 = vand.u32 %v26, 4294901760
    %966 = vmatprep.subr.mxu0 %v965
    %v967 = vand.u32 %v25, 4294901760
    %968 = vmatpush1.msra.mxu0 %v967
    %v969 = vand.u32 %v34, 4294901760
    %970 = vmatprep.subr.mxu0 %v969
    %v971 = vand.u32 %v33, 4294901760
    %972 = vmatpush1.msra.mxu0 %v971
    %v973 = vand.u32 %v42, 4294901760
    %974 = vmatprep.subr.mxu0 %v973
    %v975 = vand.u32 %v41, 4294901760
    %976 = vmatpush1.msra.mxu0 %v975
    %v977 = vand.u32 %v50, 4294901760
    %978 = vmatprep.subr.mxu0 %v977
    %v979 = vand.u32 %v49, 4294901760
    %980 = vmatpush1.msra.mxu0 %v979
    %981 = vmatprep.subr.mxu0 0.0
    %982 = vmatpush1.msra.mxu0 0.0
    %983 = vmatprep.subr.mxu0 0.0
    %984 = vmatpush1.msra.mxu0 0.0
    %985 = vmatprep.subr.mxu0 0.0
    %986 = vmatpush1.msra.mxu0 0.0
    %987 = vmatprep.subr.mxu0 0.0
    %988 = vmatpush1.msra.mxu0 0.0
    %989 = vmatprep.subr.mxu0 0.0
    %990 = vmatpush1.msra.mxu0 0.0
    %991 = vmatprep.subr.mxu0 0.0
    %992 = vmatpush1.msra.mxu0 0.0
    %993 = vmatprep.subr.mxu0 0.0
    %994 = vmatpush1.msra.mxu0 0.0
    %995 = vmatprep.subr.mxu0 0.0
    %996 = vmatpush1.msra.mxu0 0.0
    %997 = vmatprep.subr.mxu0 0.0
    %998 = vmatpush1.msra.mxu0 0.0
    %999 = vmatprep.subr.mxu0 0.0
    %1000 = vmatpush1.msra.mxu0 0.0
    %1001 = vmatprep.subr.mxu0 0.0
    %1002 = vmatpush1.msra.mxu0 0.0
    %1003 = vmatprep.subr.mxu0 0.0
    %1004 = vmatpush1.msra.mxu0 0.0
    %1005 = vmatprep.subr.mxu0 0.0
    %1006 = vmatpush1.msra.mxu0 0.0
    %1007 = vmatprep.subr.mxu0 0.0
    %1008 = vmatpush1.msra.mxu0 0.0
    %1009 = vmatprep.subr.mxu0 0.0
    %1010 = vmatpush1.msra.mxu0 0.0
    %1011 = vmatprep.subr.mxu0 0.0
    %1012 = vmatpush1.msra.mxu0 0.0
    %1013 = vmatprep.subr.mxu0 0.0
    %1014 = vmatpush1.msra.mxu0 0.0
    %1015 = vmatprep.subr.mxu0 0.0
    %1016 = vmatpush1.msra.mxu0 0.0
    %1017 = vmatprep.subr.mxu0 0.0
    %1018 = vmatpush1.msra.mxu0 0.0
    %1019 = vmatprep.subr.mxu0 0.0
    %1020 = vmatpush1.msra.mxu0 0.0
    %1021 = vmatprep.subr.mxu0 0.0
    %1022 = vmatpush1.msra.mxu0 0.0
    %1023 = vmatprep.subr.mxu0 0.0
    %1024 = vmatpush1.msra.mxu0 0.0
    %1025 = vmatprep.subr.mxu0 0.0
    %1026 = vmatpush1.msra.mxu0 0.0
    %1027 = vmatprep.subr.mxu0 0.0
    %1028 = vmatpush1.msra.mxu0 0.0
    %1029 = vmatprep.subr.mxu0 0.0
    %1030 = vmatpush1.msra.mxu0 0.0
    %1031 = vmatprep.subr.mxu0 0.0
    %1032 = vmatpush1.msra.mxu0 0.0
    %1033 = vmatprep.subr.mxu0 0.0
    %1034 = vmatpush1.msra.mxu0 0.0
    %1035 = vmatprep.subr.mxu0 0.0
    %1036 = vmatpush1.msra.mxu0 0.0
    %1037 = vmatprep.mubr.f32.mxu0 0.0
    %v1038 = vand.u32 %v57, 4294901760
    %v1039 = vsub.f32 %v57, %v1038
    %v1040 = vand.u32 %v1039, 4294901760
    %1041 = vmatmul.mubr.f32.gmra.mrb[0].mxu0 %v1040
    %v1042 = vpop.f32.mrb[0].mxu0
    %v1043 = vadd.f32 %v953, %v1042
    %v1044 = vpop.f32.mrb[0].mxu0
    %v1045 = vadd.f32 %v955, %v1044
    %1046 = vmatprep.mubr.f32.mxu0 0.0
    %v1047 = vand.u32 %v60, 4294901760
    %v1048 = vsub.f32 %v60, %v1047
    %v1049 = vand.u32 %v1048, 4294901760
    %1050 = vmatmul.mubr.f32.gmra.mrb[0].mxu0 %v1049
    %v1051 = vpop.f32.mrb[0].mxu0
    %v1052 = vadd.f32 %v961, %v1051
    %v1053 = vpop.f32.mrb[0].mxu0
    %v1054 = vadd.f32 %v963, %v1053
    %1055 = vdwg.mxu0
    %v1056 = vand.u32 %v26, 4294901760
    %v1057 = vsub.f32 %v26, %v1056
    %v1058 = vand.u32 %v1057, 4294901760
    %1059 = vmatprep.subr.mxu0 %v1058
    %v1060 = vand.u32 %v25, 4294901760
    %v1061 = vsub.f32 %v25, %v1060
    %v1062 = vand.u32 %v1061, 4294901760
    %1063 = vmatpush1.msra.mxu0 %v1062
    %v1064 = vand.u32 %v34, 4294901760
    %v1065 = vsub.f32 %v34, %v1064
    %v1066 = vand.u32 %v1065, 4294901760
    %1067 = vmatprep.subr.mxu0 %v1066
    %v1068 = vand.u32 %v33, 4294901760
    %v1069 = vsub.f32 %v33, %v1068
    %v1070 = vand.u32 %v1069, 4294901760
    %1071 = vmatpush1.msra.mxu0 %v1070
    %v1072 = vand.u32 %v42, 4294901760
    %v1073 = vsub.f32 %v42, %v1072
    %v1074 = vand.u32 %v1073, 4294901760
    %1075 = vmatprep.subr.mxu0 %v1074
    %v1076 = vand.u32 %v41, 4294901760
    %v1077 = vsub.f32 %v41, %v1076
    %v1078 = vand.u32 %v1077, 4294901760
    %1079 = vmatpush1.msra.mxu0 %v1078
    %v1080 = vand.u32 %v50, 4294901760
    %v1081 = vsub.f32 %v50, %v1080
    %v1082 = vand.u32 %v1081, 4294901760
    %1083 = vmatprep.subr.mxu0 %v1082
    %v1084 = vand.u32 %v49, 4294901760
    %v1085 = vsub.f32 %v49, %v1084
    %v1086 = vand.u32 %v1085, 4294901760
    %1087 = vmatpush1.msra.mxu0 %v1086
    %1088 = vmatprep.subr.mxu0 0.0
    %1089 = vmatpush1.msra.mxu0 0.0
    %1090 = vmatprep.subr.mxu0 0.0
    %1091 = vmatpush1.msra.mxu0 0.0
    %1092 = vmatprep.subr.mxu0 0.0
    %1093 = vmatpush1.msra.mxu0 0.0
    %1094 = vmatprep.subr.mxu0 0.0
    %1095 = vmatpush1.msra.mxu0 0.0
    %1096 = vmatprep.subr.mxu0 0.0
    %1097 = vmatpush1.msra.mxu0 0.0
    %1098 = vmatprep.subr.mxu0 0.0
    %1099 = vmatpush1.msra.mxu0 0.0
    %1100 = vmatprep.subr.mxu0 0.0
    %1101 = vmatpush1.msra.mxu0 0.0
    %1102 = vmatprep.subr.mxu0 0.0
    %1103 = vmatpush1.msra.mxu0 0.0
    %1104 = vmatprep.subr.mxu0 0.0
    %1105 = vmatpush1.msra.mxu0 0.0
    %1106 = vmatprep.subr.mxu0 0.0
    %1107 = vmatpush1.msra.mxu0 0.0
    %1108 = vmatprep.subr.mxu0 0.0
    %1109 = vmatpush1.msra.mxu0 0.0
    %1110 = vmatprep.subr.mxu0 0.0
    %1111 = vmatpush1.msra.mxu0 0.0
    %1112 = vmatprep.subr.mxu0 0.0
    %1113 = vmatpush1.msra.mxu0 0.0
    %1114 = vmatprep.subr.mxu0 0.0
    %1115 = vmatpush1.msra.mxu0 0.0
    %1116 = vmatprep.subr.mxu0 0.0
    %1117 = vmatpush1.msra.mxu0 0.0
    %1118 = vmatprep.subr.mxu0 0.0
    %1119 = vmatpush1.msra.mxu0 0.0
    %1120 = vmatprep.subr.mxu0 0.0
    %1121 = vmatpush1.msra.mxu0 0.0
    %1122 = vmatprep.subr.mxu0 0.0
    %1123 = vmatpush1.msra.mxu0 0.0
    %1124 = vmatprep.subr.mxu0 0.0
    %1125 = vmatpush1.msra.mxu0 0.0
    %1126 = vmatprep.subr.mxu0 0.0
    %1127 = vmatpush1.msra.mxu0 0.0
    %1128 = vmatprep.subr.mxu0 0.0
    %1129 = vmatpush1.msra.mxu0 0.0
    %1130 = vmatprep.subr.mxu0 0.0
    %1131 = vmatpush1.msra.mxu0 0.0
    %1132 = vmatprep.subr.mxu0 0.0
    %1133 = vmatpush1.msra.mxu0 0.0
    %1134 = vmatprep.subr.mxu0 0.0
    %1135 = vmatpush1.msra.mxu0 0.0
    %1136 = vmatprep.subr.mxu0 0.0
    %1137 = vmatpush1.msra.mxu0 0.0
    %1138 = vmatprep.subr.mxu0 0.0
    %1139 = vmatpush1.msra.mxu0 0.0
    %1140 = vmatprep.subr.mxu0 0.0
    %1141 = vmatpush1.msra.mxu0 0.0
    %1142 = vmatprep.subr.mxu0 0.0
    %1143 = vmatpush1.msra.mxu0 0.0
    %1144 = vmatprep.mubr.f32.mxu0 0.0
    %v1145 = vand.u32 %v57, 4294901760
    %1146 = vmatmul.mubr.f32.gmra.mrb[0].mxu0 %v1145
    %v1147 = vpop.f32.mrb[0].mxu0
    %v1148 = vadd.f32 %v1043, %v1147
    %v1149 = vpop.f32.mrb[0].mxu0
    %v1150 = vadd.f32 %v1045, %v1149
    %1151 = vmatprep.mubr.f32.mxu0 0.0
    %v1152 = vand.u32 %v60, 4294901760
    %1153 = vmatmul.mubr.f32.gmra.mrb[0].mxu0 %v1152
    %v1154 = vpop.f32.mrb[0].mxu0
    %v1155 = vadd.f32 %v1052, %v1154
    %v1156 = vpop.f32.mrb[0].mxu0
    %v1157 = vadd.f32 %v1054, %v1156
    %1158 = vdwg.mxu0
    %v1159 = vand.u32 %v26, 4294901760
    %1160 = vmatprep.subr.mxu0 %v1159
    %v1161 = vand.u32 %v25, 4294901760
    %1162 = vmatpush1.msra.mxu0 %v1161
    %v1163 = vand.u32 %v34, 4294901760
    %1164 = vmatprep.subr.mxu0 %v1163
    %v1165 = vand.u32 %v33, 4294901760
    %1166 = vmatpush1.msra.mxu0 %v1165
    %v1167 = vand.u32 %v42, 4294901760
    %1168 = vmatprep.subr.mxu0 %v1167
    %v1169 = vand.u32 %v41, 4294901760
    %1170 = vmatpush1.msra.mxu0 %v1169
    %v1171 = vand.u32 %v50, 4294901760
    %1172 = vmatprep.subr.mxu0 %v1171
    %v1173 = vand.u32 %v49, 4294901760
    %1174 = vmatpush1.msra.mxu0 %v1173
    %1175 = vmatprep.subr.mxu0 0.0
    %1176 = vmatpush1.msra.mxu0 0.0
    %1177 = vmatprep.subr.mxu0 0.0
    %1178 = vmatpush1.msra.mxu0 0.0
    %1179 = vmatprep.subr.mxu0 0.0
    %1180 = vmatpush1.msra.mxu0 0.0
    %1181 = vmatprep.subr.mxu0 0.0
    %1182 = vmatpush1.msra.mxu0 0.0
    %1183 = vmatprep.subr.mxu0 0.0
    %1184 = vmatpush1.msra.mxu0 0.0
    %1185 = vmatprep.subr.mxu0 0.0
    %1186 = vmatpush1.msra.mxu0 0.0
    %1187 = vmatprep.subr.mxu0 0.0
    %1188 = vmatpush1.msra.mxu0 0.0
    %1189 = vmatprep.subr.mxu0 0.0
    %1190 = vmatpush1.msra.mxu0 0.0
    %1191 = vmatprep.subr.mxu0 0.0
    %1192 = vmatpush1.msra.mxu0 0.0
    %1193 = vmatprep.subr.mxu0 0.0
    %1194 = vmatpush1.msra.mxu0 0.0
    %1195 = vmatprep.subr.mxu0 0.0
    %1196 = vmatpush1.msra.mxu0 0.0
    %1197 = vmatprep.subr.mxu0 0.0
    %1198 = vmatpush1.msra.mxu0 0.0
    %1199 = vmatprep.subr.mxu0 0.0
    %1200 = vmatpush1.msra.mxu0 0.0
    %1201 = vmatprep.subr.mxu0 0.0
    %1202 = vmatpush1.msra.mxu0 0.0
    %1203 = vmatprep.subr.mxu0 0.0
    %1204 = vmatpush1.msra.mxu0 0.0
    %1205 = vmatprep.subr.mxu0 0.0
    %1206 = vmatpush1.msra.mxu0 0.0
    %1207 = vmatprep.subr.mxu0 0.0
    %1208 = vmatpush1.msra.mxu0 0.0
    %1209 = vmatprep.subr.mxu0 0.0
    %1210 = vmatpush1.msra.mxu0 0.0
    %1211 = vmatprep.subr.mxu0 0.0
    %1212 = vmatpush1.msra.mxu0 0.0
    %1213 = vmatprep.subr.mxu0 0.0
    %1214 = vmatpush1.msra.mxu0 0.0
    %1215 = vmatprep.subr.mxu0 0.0
    %1216 = vmatpush1.msra.mxu0 0.0
    %1217 = vmatprep.subr.mxu0 0.0
    %1218 = vmatpush1.msra.mxu0 0.0
    %1219 = vmatprep.subr.mxu0 0.0
    %1220 = vmatpush1.msra.mxu0 0.0
    %1221 = vmatprep.subr.mxu0 0.0
    %1222 = vmatpush1.msra.mxu0 0.0
    %1223 = vmatprep.subr.mxu0 0.0
    %1224 = vmatpush1.msra.mxu0 0.0
    %1225 = vmatprep.subr.mxu0 0.0
    %1226 = vmatpush1.msra.mxu0 0.0
    %1227 = vmatprep.subr.mxu0 0.0
    %1228 = vmatpush1.msra.mxu0 0.0
    %1229 = vmatprep.subr.mxu0 0.0
    %1230 = vmatpush1.msra.mxu0 0.0
    %1231 = vmatprep.mubr.f32.mxu0 0.0
    %v1232 = vand.u32 %v57, 4294901760
    %1233 = vmatmul.mubr.f32.gmra.mrb[0].mxu0 %v1232
    %v1234 = vpop.f32.mrb[0].mxu0
    %v1235 = vadd.f32 %v1148, %v1234
    %v1236 = vpop.f32.mrb[0].mxu0
    %v1237 = vadd.f32 %v1150, %v1236
    %1238 = vmatprep.mubr.f32.mxu0 0.0
    %v1239 = vand.u32 %v60, 4294901760
    %1240 = vmatmul.mubr.f32.gmra.mrb[0].mxu0 %v1239
    %v1241 = vpop.f32.mrb[0].mxu0
    %v1242 = vadd.f32 %v1155, %v1241
    %v1243 = vpop.f32.mrb[0].mxu0
    %v1244 = vadd.f32 %v1157, %v1243
    %1245 = vdwg.mxu0
    %v1246 = vand.u32 %v28, 4294901760
    %1247 = vmatprep.subr.mxu0 %v1246
    %v1248 = vand.u32 %v27, 4294901760
    %1249 = vmatpush1.msra.mxu0 %v1248
    %v1250 = vand.u32 %v36, 4294901760
    %1251 = vmatprep.subr.mxu0 %v1250
    %v1252 = vand.u32 %v35, 4294901760
    %1253 = vmatpush1.msra.mxu0 %v1252
    %v1254 = vand.u32 %v44, 4294901760
    %1255 = vmatprep.subr.mxu0 %v1254
    %v1256 = vand.u32 %v43, 4294901760
    %1257 = vmatpush1.msra.mxu0 %v1256
    %v1258 = vand.u32 %v52, 4294901760
    %1259 = vmatprep.subr.mxu0 %v1258
    %v1260 = vand.u32 %v51, 4294901760
    %1261 = vmatpush1.msra.mxu0 %v1260
    %1262 = vmatprep.subr.mxu0 0.0
    %1263 = vmatpush1.msra.mxu0 0.0
    %1264 = vmatprep.subr.mxu0 0.0
    %1265 = vmatpush1.msra.mxu0 0.0
    %1266 = vmatprep.subr.mxu0 0.0
    %1267 = vmatpush1.msra.mxu0 0.0
    %1268 = vmatprep.subr.mxu0 0.0
    %1269 = vmatpush1.msra.mxu0 0.0
    %1270 = vmatprep.subr.mxu0 0.0
    %1271 = vmatpush1.msra.mxu0 0.0
    %1272 = vmatprep.subr.mxu0 0.0
    %1273 = vmatpush1.msra.mxu0 0.0
    %1274 = vmatprep.subr.mxu0 0.0
    %1275 = vmatpush1.msra.mxu0 0.0
    %1276 = vmatprep.subr.mxu0 0.0
    %1277 = vmatpush1.msra.mxu0 0.0
    %1278 = vmatprep.subr.mxu0 0.0
    %1279 = vmatpush1.msra.mxu0 0.0
    %1280 = vmatprep.subr.mxu0 0.0
    %1281 = vmatpush1.msra.mxu0 0.0
    %1282 = vmatprep.subr.mxu0 0.0
    %1283 = vmatpush1.msra.mxu0 0.0
    %1284 = vmatprep.subr.mxu0 0.0
    %1285 = vmatpush1.msra.mxu0 0.0
    %1286 = vmatprep.subr.mxu0 0.0
    %1287 = vmatpush1.msra.mxu0 0.0
    %1288 = vmatprep.subr.mxu0 0.0
    %1289 = vmatpush1.msra.mxu0 0.0
    %1290 = vmatprep.subr.mxu0 0.0
    %1291 = vmatpush1.msra.mxu0 0.0
    %1292 = vmatprep.subr.mxu0 0.0
    %1293 = vmatpush1.msra.mxu0 0.0
    %1294 = vmatprep.subr.mxu0 0.0
    %1295 = vmatpush1.msra.mxu0 0.0
    %1296 = vmatprep.subr.mxu0 0.0
    %1297 = vmatpush1.msra.mxu0 0.0
    %1298 = vmatprep.subr.mxu0 0.0
    %1299 = vmatpush1.msra.mxu0 0.0
    %1300 = vmatprep.subr.mxu0 0.0
    %1301 = vmatpush1.msra.mxu0 0.0
    %1302 = vmatprep.subr.mxu0 0.0
    %1303 = vmatpush1.msra.mxu0 0.0
    %1304 = vmatprep.subr.mxu0 0.0
    %1305 = vmatpush1.msra.mxu0 0.0
    %1306 = vmatprep.subr.mxu0 0.0
    %1307 = vmatpush1.msra.mxu0 0.0
    %1308 = vmatprep.subr.mxu0 0.0
    %1309 = vmatpush1.msra.mxu0 0.0
    %1310 = vmatprep.subr.mxu0 0.0
    %1311 = vmatpush1.msra.mxu0 0.0
    %1312 = vmatprep.subr.mxu0 0.0
    %1313 = vmatpush1.msra.mxu0 0.0
    %1314 = vmatprep.subr.mxu0 0.0
    %1315 = vmatpush1.msra.mxu0 0.0
    %1316 = vmatprep.subr.mxu0 0.0
    %1317 = vmatpush1.msra.mxu0 0.0
    %1318 = vmatprep.mubr.f32.mxu0 0.0
    %v1319 = vand.u32 %v57, 4294901760
    %v1320 = vsub.f32 %v57, %v1319
    %v1321 = vand.u32 %v1320, 4294901760
    %v1322 = vsub.f32 %v1320, %v1321
    %v1323 = vand.u32 %v1322, 4294901760
    %1324 = vmatmul.mubr.f32.gmra.mrb[0].mxu0 %v1323
    %v1325 = vpop.f32.mrb[0].mxu0
    %v1326 = vadd.f32 0.0, %v1325
    %v1327 = vpop.f32.mrb[0].mxu0
    %v1328 = vadd.f32 0.0, %v1327
    %1329 = vmatprep.mubr.f32.mxu0 0.0
    %v1330 = vand.u32 %v60, 4294901760
    %v1331 = vsub.f32 %v60, %v1330
    %v1332 = vand.u32 %v1331, 4294901760
    %v1333 = vsub.f32 %v1331, %v1332
    %v1334 = vand.u32 %v1333, 4294901760
    %1335 = vmatmul.mubr.f32.gmra.mrb[0].mxu0 %v1334
    %v1336 = vpop.f32.mrb[0].mxu0
    %v1337 = vadd.f32 0.0, %v1336
    %v1338 = vpop.f32.mrb[0].mxu0
    %v1339 = vadd.f32 0.0, %v1338
    %1340 = vdwg.mxu0
    %v1341 = vand.u32 %v28, 4294901760
    %v1342 = vsub.f32 %v28, %v1341
    %v1343 = vand.u32 %v1342, 4294901760
    %v1344 = vsub.f32 %v1342, %v1343
    %v1345 = vand.u32 %v1344, 4294901760
    %1346 = vmatprep.subr.mxu0 %v1345
    %v1347 = vand.u32 %v27, 4294901760
    %v1348 = vsub.f32 %v27, %v1347
    %v1349 = vand.u32 %v1348, 4294901760
    %v1350 = vsub.f32 %v1348, %v1349
    %v1351 = vand.u32 %v1350, 4294901760
    %1352 = vmatpush1.msra.mxu0 %v1351
    %v1353 = vand.u32 %v36, 4294901760
    %v1354 = vsub.f32 %v36, %v1353
    %v1355 = vand.u32 %v1354, 4294901760
    %v1356 = vsub.f32 %v1354, %v1355
    %v1357 = vand.u32 %v1356, 4294901760
    %1358 = vmatprep.subr.mxu0 %v1357
    %v1359 = vand.u32 %v35, 4294901760
    %v1360 = vsub.f32 %v35, %v1359
    %v1361 = vand.u32 %v1360, 4294901760
    %v1362 = vsub.f32 %v1360, %v1361
    %v1363 = vand.u32 %v1362, 4294901760
    %1364 = vmatpush1.msra.mxu0 %v1363
    %v1365 = vand.u32 %v44, 4294901760
    %v1366 = vsub.f32 %v44, %v1365
    %v1367 = vand.u32 %v1366, 4294901760
    %v1368 = vsub.f32 %v1366, %v1367
    %v1369 = vand.u32 %v1368, 4294901760
    %1370 = vmatprep.subr.mxu0 %v1369
    %v1371 = vand.u32 %v43, 4294901760
    %v1372 = vsub.f32 %v43, %v1371
    %v1373 = vand.u32 %v1372, 4294901760
    %v1374 = vsub.f32 %v1372, %v1373
    %v1375 = vand.u32 %v1374, 4294901760
    %1376 = vmatpush1.msra.mxu0 %v1375
    %v1377 = vand.u32 %v52, 4294901760
    %v1378 = vsub.f32 %v52, %v1377
    %v1379 = vand.u32 %v1378, 4294901760
    %v1380 = vsub.f32 %v1378, %v1379
    %v1381 = vand.u32 %v1380, 4294901760
    %1382 = vmatprep.subr.mxu0 %v1381
    %v1383 = vand.u32 %v51, 4294901760
    %v1384 = vsub.f32 %v51, %v1383
    %v1385 = vand.u32 %v1384, 4294901760
    %v1386 = vsub.f32 %v1384, %v1385
    %v1387 = vand.u32 %v1386, 4294901760
    %1388 = vmatpush1.msra.mxu0 %v1387
    %1389 = vmatprep.subr.mxu0 0.0
    %1390 = vmatpush1.msra.mxu0 0.0
    %1391 = vmatprep.subr.mxu0 0.0
    %1392 = vmatpush1.msra.mxu0 0.0
    %1393 = vmatprep.subr.mxu0 0.0
    %1394 = vmatpush1.msra.mxu0 0.0
    %1395 = vmatprep.subr.mxu0 0.0
    %1396 = vmatpush1.msra.mxu0 0.0
    %1397 = vmatprep.subr.mxu0 0.0
    %1398 = vmatpush1.msra.mxu0 0.0
    %1399 = vmatprep.subr.mxu0 0.0
    %1400 = vmatpush1.msra.mxu0 0.0
    %1401 = vmatprep.subr.mxu0 0.0
    %1402 = vmatpush1.msra.mxu0 0.0
    %1403 = vmatprep.subr.mxu0 0.0
    %1404 = vmatpush1.msra.mxu0 0.0
    %1405 = vmatprep.subr.mxu0 0.0
    %1406 = vmatpush1.msra.mxu0 0.0
    %1407 = vmatprep.subr.mxu0 0.0
    %1408 = vmatpush1.msra.mxu0 0.0
    %1409 = vmatprep.subr.mxu0 0.0
    %1410 = vmatpush1.msra.mxu0 0.0
    %1411 = vmatprep.subr.mxu0 0.0
    %1412 = vmatpush1.msra.mxu0 0.0
    %1413 = vmatprep.subr.mxu0 0.0
    %1414 = vmatpush1.msra.mxu0 0.0
    %1415 = vmatprep.subr.mxu0 0.0
    %1416 = vmatpush1.msra.mxu0 0.0
    %1417 = vmatprep.subr.mxu0 0.0
    %1418 = vmatpush1.msra.mxu0 0.0
    %1419 = vmatprep.subr.mxu0 0.0
    %1420 = vmatpush1.msra.mxu0 0.0
    %1421 = vmatprep.subr.mxu0 0.0
    %1422 = vmatpush1.msra.mxu0 0.0
    %1423 = vmatprep.subr.mxu0 0.0
    %1424 = vmatpush1.msra.mxu0 0.0
    %1425 = vmatprep.subr.mxu0 0.0
    %1426 = vmatpush1.msra.mxu0 0.0
    %1427 = vmatprep.subr.mxu0 0.0
    %1428 = vmatpush1.msra.mxu0 0.0
    %1429 = vmatprep.subr.mxu0 0.0
    %1430 = vmatpush1.msra.mxu0 0.0
    %1431 = vmatprep.subr.mxu0 0.0
    %1432 = vmatpush1.msra.mxu0 0.0
    %1433 = vmatprep.subr.mxu0 0.0
    %1434 = vmatpush1.msra.mxu0 0.0
    %1435 = vmatprep.subr.mxu0 0.0
    %1436 = vmatpush1.msra.mxu0 0.0
    %1437 = vmatprep.subr.mxu0 0.0
    %1438 = vmatpush1.msra.mxu0 0.0
    %1439 = vmatprep.subr.mxu0 0.0
    %1440 = vmatpush1.msra.mxu0 0.0
    %1441 = vmatprep.subr.mxu0 0.0
    %1442 = vmatpush1.msra.mxu0 0.0
    %1443 = vmatprep.subr.mxu0 0.0
    %1444 = vmatpush1.msra.mxu0 0.0
    %1445 = vmatprep.mubr.f32.mxu0 0.0
    %v1446 = vand.u32 %v57, 4294901760
    %1447 = vmatmul.mubr.f32.gmra.mrb[0].mxu0 %v1446
    %v1448 = vpop.f32.mrb[0].mxu0
    %v1449 = vadd.f32 %v1326, %v1448
    %v1450 = vpop.f32.mrb[0].mxu0
    %v1451 = vadd.f32 %v1328, %v1450
    %1452 = vmatprep.mubr.f32.mxu0 0.0
    %v1453 = vand.u32 %v60, 4294901760
    %1454 = vmatmul.mubr.f32.gmra.mrb[0].mxu0 %v1453
    %v1455 = vpop.f32.mrb[0].mxu0
    %v1456 = vadd.f32 %v1337, %v1455
    %v1457 = vpop.f32.mrb[0].mxu0
    %v1458 = vadd.f32 %v1339, %v1457
    %1459 = vdwg.mxu0
    %v1460 = vand.u32 %v28, 4294901760
    %v1461 = vsub.f32 %v28, %v1460
    %1462 = vmatprep.subr.mxu0 %v1461
    %v1463 = vand.u32 %v27, 4294901760
    %v1464 = vsub.f32 %v27, %v1463
    %1465 = vmatpush1.msra.mxu0 %v1464
    %v1466 = vand.u32 %v36, 4294901760
    %v1467 = vsub.f32 %v36, %v1466
    %1468 = vmatprep.subr.mxu0 %v1467
    %v1469 = vand.u32 %v35, 4294901760
    %v1470 = vsub.f32 %v35, %v1469
    %1471 = vmatpush1.msra.mxu0 %v1470
    %v1472 = vand.u32 %v44, 4294901760
    %v1473 = vsub.f32 %v44, %v1472
    %1474 = vmatprep.subr.mxu0 %v1473
    %v1475 = vand.u32 %v43, 4294901760
    %v1476 = vsub.f32 %v43, %v1475
    %1477 = vmatpush1.msra.mxu0 %v1476
    %v1478 = vand.u32 %v52, 4294901760
    %v1479 = vsub.f32 %v52, %v1478
    %1480 = vmatprep.subr.mxu0 %v1479
    %v1481 = vand.u32 %v51, 4294901760
    %v1482 = vsub.f32 %v51, %v1481
    %1483 = vmatpush1.msra.mxu0 %v1482
    %1484 = vmatprep.subr.mxu0 0.0
    %1485 = vmatpush1.msra.mxu0 0.0
    %1486 = vmatprep.subr.mxu0 0.0
    %1487 = vmatpush1.msra.mxu0 0.0
    %1488 = vmatprep.subr.mxu0 0.0
    %1489 = vmatpush1.msra.mxu0 0.0
    %1490 = vmatprep.subr.mxu0 0.0
    %1491 = vmatpush1.msra.mxu0 0.0
    %1492 = vmatprep.subr.mxu0 0.0
    %1493 = vmatpush1.msra.mxu0 0.0
    %1494 = vmatprep.subr.mxu0 0.0
    %1495 = vmatpush1.msra.mxu0 0.0
    %1496 = vmatprep.subr.mxu0 0.0
    %1497 = vmatpush1.msra.mxu0 0.0
    %1498 = vmatprep.subr.mxu0 0.0
    %1499 = vmatpush1.msra.mxu0 0.0
    %1500 = vmatprep.subr.mxu0 0.0
    %1501 = vmatpush1.msra.mxu0 0.0
    %1502 = vmatprep.subr.mxu0 0.0
    %1503 = vmatpush1.msra.mxu0 0.0
    %1504 = vmatprep.subr.mxu0 0.0
    %1505 = vmatpush1.msra.mxu0 0.0
    %1506 = vmatprep.subr.mxu0 0.0
    %1507 = vmatpush1.msra.mxu0 0.0
    %1508 = vmatprep.subr.mxu0 0.0
    %1509 = vmatpush1.msra.mxu0 0.0
    %1510 = vmatprep.subr.mxu0 0.0
    %1511 = vmatpush1.msra.mxu0 0.0
    %1512 = vmatprep.subr.mxu0 0.0
    %1513 = vmatpush1.msra.mxu0 0.0
    %1514 = vmatprep.subr.mxu0 0.0
    %1515 = vmatpush1.msra.mxu0 0.0
    %1516 = vmatprep.subr.mxu0 0.0
    %1517 = vmatpush1.msra.mxu0 0.0
    %1518 = vmatprep.subr.mxu0 0.0
    %1519 = vmatpush1.msra.mxu0 0.0
    %1520 = vmatprep.subr.mxu0 0.0
    %1521 = vmatpush1.msra.mxu0 0.0
    %1522 = vmatprep.subr.mxu0 0.0
    %1523 = vmatpush1.msra.mxu0 0.0
    %1524 = vmatprep.subr.mxu0 0.0
    %1525 = vmatpush1.msra.mxu0 0.0
    %1526 = vmatprep.subr.mxu0 0.0
    %1527 = vmatpush1.msra.mxu0 0.0
    %1528 = vmatprep.subr.mxu0 0.0
    %1529 = vmatpush1.msra.mxu0 0.0
    %1530 = vmatprep.subr.mxu0 0.0
    %1531 = vmatpush1.msra.mxu0 0.0
    %1532 = vmatprep.subr.mxu0 0.0
    %1533 = vmatpush1.msra.mxu0 0.0
    %1534 = vmatprep.subr.mxu0 0.0
    %1535 = vmatpush1.msra.mxu0 0.0
    %1536 = vmatprep.subr.mxu0 0.0
    %1537 = vmatpush1.msra.mxu0 0.0
    %1538 = vmatprep.subr.mxu0 0.0
    %1539 = vmatpush1.msra.mxu0 0.0
    %1540 = vmatprep.mubr.f32.mxu0 0.0
    %v1541 = vand.u32 %v57, 4294901760
    %v1542 = vsub.f32 %v57, %v1541
    %1543 = vmatmul.mubr.f32.gmra.mrb[0].mxu0 %v1542
    %v1544 = vpop.f32.mrb[0].mxu0
    %v1545 = vadd.f32 %v1449, %v1544
    %v1546 = vpop.f32.mrb[0].mxu0
    %v1547 = vadd.f32 %v1451, %v1546
    %1548 = vmatprep.mubr.f32.mxu0 0.0
    %v1549 = vand.u32 %v60, 4294901760
    %v1550 = vsub.f32 %v60, %v1549
    %1551 = vmatmul.mubr.f32.gmra.mrb[0].mxu0 %v1550
    %v1552 = vpop.f32.mrb[0].mxu0
    %v1553 = vadd.f32 %v1456, %v1552
    %v1554 = vpop.f32.mrb[0].mxu0
    %v1555 = vadd.f32 %v1458, %v1554
    %1556 = vdwg.mxu0
    %v1557 = vand.u32 %v28, 4294901760
    %1558 = vmatprep.subr.mxu0 %v1557
    %v1559 = vand.u32 %v27, 4294901760
    %1560 = vmatpush1.msra.mxu0 %v1559
    %v1561 = vand.u32 %v36, 4294901760
    %1562 = vmatprep.subr.mxu0 %v1561
    %v1563 = vand.u32 %v35, 4294901760
    %1564 = vmatpush1.msra.mxu0 %v1563
    %v1565 = vand.u32 %v44, 4294901760
    %1566 = vmatprep.subr.mxu0 %v1565
    %v1567 = vand.u32 %v43, 4294901760
    %1568 = vmatpush1.msra.mxu0 %v1567
    %v1569 = vand.u32 %v52, 4294901760
    %1570 = vmatprep.subr.mxu0 %v1569
    %v1571 = vand.u32 %v51, 4294901760
    %1572 = vmatpush1.msra.mxu0 %v1571
    %1573 = vmatprep.subr.mxu0 0.0
    %1574 = vmatpush1.msra.mxu0 0.0
    %1575 = vmatprep.subr.mxu0 0.0
    %1576 = vmatpush1.msra.mxu0 0.0
    %1577 = vmatprep.subr.mxu0 0.0
    %1578 = vmatpush1.msra.mxu0 0.0
    %1579 = vmatprep.subr.mxu0 0.0
    %1580 = vmatpush1.msra.mxu0 0.0
    %1581 = vmatprep.subr.mxu0 0.0
    %1582 = vmatpush1.msra.mxu0 0.0
    %1583 = vmatprep.subr.mxu0 0.0
    %1584 = vmatpush1.msra.mxu0 0.0
    %1585 = vmatprep.subr.mxu0 0.0
    %1586 = vmatpush1.msra.mxu0 0.0
    %1587 = vmatprep.subr.mxu0 0.0
    %1588 = vmatpush1.msra.mxu0 0.0
    %1589 = vmatprep.subr.mxu0 0.0
    %1590 = vmatpush1.msra.mxu0 0.0
    %1591 = vmatprep.subr.mxu0 0.0
    %1592 = vmatpush1.msra.mxu0 0.0
    %1593 = vmatprep.subr.mxu0 0.0
    %1594 = vmatpush1.msra.mxu0 0.0
    %1595 = vmatprep.subr.mxu0 0.0
    %1596 = vmatpush1.msra.mxu0 0.0
    %1597 = vmatprep.subr.mxu0 0.0
    %1598 = vmatpush1.msra.mxu0 0.0
    %1599 = vmatprep.subr.mxu0 0.0
    %1600 = vmatpush1.msra.mxu0 0.0
    %1601 = vmatprep.subr.mxu0 0.0
    %1602 = vmatpush1.msra.mxu0 0.0
    %1603 = vmatprep.subr.mxu0 0.0
    %1604 = vmatpush1.msra.mxu0 0.0
    %1605 = vmatprep.subr.mxu0 0.0
    %1606 = vmatpush1.msra.mxu0 0.0
    %1607 = vmatprep.subr.mxu0 0.0
    %1608 = vmatpush1.msra.mxu0 0.0
    %1609 = vmatprep.subr.mxu0 0.0
    %1610 = vmatpush1.msra.mxu0 0.0
    %1611 = vmatprep.subr.mxu0 0.0
    %1612 = vmatpush1.msra.mxu0 0.0
    %1613 = vmatprep.subr.mxu0 0.0
    %1614 = vmatpush1.msra.mxu0 0.0
    %1615 = vmatprep.subr.mxu0 0.0
    %1616 = vmatpush1.msra.mxu0 0.0
    %1617 = vmatprep.subr.mxu0 0.0
    %1618 = vmatpush1.msra.mxu0 0.0
    %1619 = vmatprep.subr.mxu0 0.0
    %1620 = vmatpush1.msra.mxu0 0.0
    %1621 = vmatprep.subr.mxu0 0.0
    %1622 = vmatpush1.msra.mxu0 0.0
    %1623 = vmatprep.subr.mxu0 0.0
    %1624 = vmatpush1.msra.mxu0 0.0
    %1625 = vmatprep.subr.mxu0 0.0
    %1626 = vmatpush1.msra.mxu0 0.0
    %1627 = vmatprep.subr.mxu0 0.0
    %1628 = vmatpush1.msra.mxu0 0.0
    %1629 = vmatprep.mubr.f32.mxu0 0.0
    %v1630 = vand.u32 %v57, 4294901760
    %v1631 = vsub.f32 %v57, %v1630
    %v1632 = vand.u32 %v1631, 4294901760
    %1633 = vmatmul.mubr.f32.gmra.mrb[0].mxu0 %v1632
    %v1634 = vpop.f32.mrb[0].mxu0
    %v1635 = vadd.f32 %v1545, %v1634
    %v1636 = vpop.f32.mrb[0].mxu0
    %v1637 = vadd.f32 %v1547, %v1636
    %1638 = vmatprep.mubr.f32.mxu0 0.0
    %v1639 = vand.u32 %v60, 4294901760
    %v1640 = vsub.f32 %v60, %v1639
    %v1641 = vand.u32 %v1640, 4294901760
    %1642 = vmatmul.mubr.f32.gmra.mrb[0].mxu0 %v1641
    %v1643 = vpop.f32.mrb[0].mxu0
    %v1644 = vadd.f32 %v1553, %v1643
    %v1645 = vpop.f32.mrb[0].mxu0
    %v1646 = vadd.f32 %v1555, %v1645
    %1647 = vdwg.mxu0
    %v1648 = vand.u32 %v28, 4294901760
    %v1649 = vsub.f32 %v28, %v1648
    %v1650 = vand.u32 %v1649, 4294901760
    %1651 = vmatprep.subr.mxu0 %v1650
    %v1652 = vand.u32 %v27, 4294901760
    %v1653 = vsub.f32 %v27, %v1652
    %v1654 = vand.u32 %v1653, 4294901760
    %1655 = vmatpush1.msra.mxu0 %v1654
    %v1656 = vand.u32 %v36, 4294901760
    %v1657 = vsub.f32 %v36, %v1656
    %v1658 = vand.u32 %v1657, 4294901760
    %1659 = vmatprep.subr.mxu0 %v1658
    %v1660 = vand.u32 %v35, 4294901760
    %v1661 = vsub.f32 %v35, %v1660
    %v1662 = vand.u32 %v1661, 4294901760
    %1663 = vmatpush1.msra.mxu0 %v1662
    %v1664 = vand.u32 %v44, 4294901760
    %v1665 = vsub.f32 %v44, %v1664
    %v1666 = vand.u32 %v1665, 4294901760
    %1667 = vmatprep.subr.mxu0 %v1666
    %v1668 = vand.u32 %v43, 4294901760
    %v1669 = vsub.f32 %v43, %v1668
    %v1670 = vand.u32 %v1669, 4294901760
    %1671 = vmatpush1.msra.mxu0 %v1670
    %v1672 = vand.u32 %v52, 4294901760
    %v1673 = vsub.f32 %v52, %v1672
    %v1674 = vand.u32 %v1673, 4294901760
    %1675 = vmatprep.subr.mxu0 %v1674
    %v1676 = vand.u32 %v51, 4294901760
    %v1677 = vsub.f32 %v51, %v1676
    %v1678 = vand.u32 %v1677, 4294901760
    %1679 = vmatpush1.msra.mxu0 %v1678
    %1680 = vmatprep.subr.mxu0 0.0
    %1681 = vmatpush1.msra.mxu0 0.0
    %1682 = vmatprep.subr.mxu0 0.0
    %1683 = vmatpush1.msra.mxu0 0.0
    %1684 = vmatprep.subr.mxu0 0.0
    %1685 = vmatpush1.msra.mxu0 0.0
    %1686 = vmatprep.subr.mxu0 0.0
    %1687 = vmatpush1.msra.mxu0 0.0
    %1688 = vmatprep.subr.mxu0 0.0
    %1689 = vmatpush1.msra.mxu0 0.0
    %1690 = vmatprep.subr.mxu0 0.0
    %1691 = vmatpush1.msra.mxu0 0.0
    %1692 = vmatprep.subr.mxu0 0.0
    %1693 = vmatpush1.msra.mxu0 0.0
    %1694 = vmatprep.subr.mxu0 0.0
    %1695 = vmatpush1.msra.mxu0 0.0
    %1696 = vmatprep.subr.mxu0 0.0
    %1697 = vmatpush1.msra.mxu0 0.0
    %1698 = vmatprep.subr.mxu0 0.0
    %1699 = vmatpush1.msra.mxu0 0.0
    %1700 = vmatprep.subr.mxu0 0.0
    %1701 = vmatpush1.msra.mxu0 0.0
    %1702 = vmatprep.subr.mxu0 0.0
    %1703 = vmatpush1.msra.mxu0 0.0
    %1704 = vmatprep.subr.mxu0 0.0
    %1705 = vmatpush1.msra.mxu0 0.0
    %1706 = vmatprep.subr.mxu0 0.0
    %1707 = vmatpush1.msra.mxu0 0.0
    %1708 = vmatprep.subr.mxu0 0.0
    %1709 = vmatpush1.msra.mxu0 0.0
    %1710 = vmatprep.subr.mxu0 0.0
    %1711 = vmatpush1.msra.mxu0 0.0
    %1712 = vmatprep.subr.mxu0 0.0
    %1713 = vmatpush1.msra.mxu0 0.0
    %1714 = vmatprep.subr.mxu0 0.0
    %1715 = vmatpush1.msra.mxu0 0.0
    %1716 = vmatprep.subr.mxu0 0.0
    %1717 = vmatpush1.msra.mxu0 0.0
    %1718 = vmatprep.subr.mxu0 0.0
    %1719 = vmatpush1.msra.mxu0 0.0
    %1720 = vmatprep.subr.mxu0 0.0
    %1721 = vmatpush1.msra.mxu0 0.0
    %1722 = vmatprep.subr.mxu0 0.0
    %1723 = vmatpush1.msra.mxu0 0.0
    %1724 = vmatprep.subr.mxu0 0.0
    %1725 = vmatpush1.msra.mxu0 0.0
    %1726 = vmatprep.subr.mxu0 0.0
    %1727 = vmatpush1.msra.mxu0 0.0
    %1728 = vmatprep.subr.mxu0 0.0
    %1729 = vmatpush1.msra.mxu0 0.0
    %1730 = vmatprep.subr.mxu0 0.0
    %1731 = vmatpush1.msra.mxu0 0.0
    %1732 = vmatprep.subr.mxu0 0.0
    %1733 = vmatpush1.msra.mxu0 0.0
    %1734 = vmatprep.subr.mxu0 0.0
    %1735 = vmatpush1.msra.mxu0 0.0
    %1736 = vmatprep.mubr.f32.mxu0 0.0
    %v1737 = vand.u32 %v57, 4294901760
    %1738 = vmatmul.mubr.f32.gmra.mrb[0].mxu0 %v1737
    %v1739 = vpop.f32.mrb[0].mxu0
    %v1740 = vadd.f32 %v1635, %v1739
    %v1741 = vpop.f32.mrb[0].mxu0
    %v1742 = vadd.f32 %v1637, %v1741
    %1743 = vmatprep.mubr.f32.mxu0 0.0
    %v1744 = vand.u32 %v60, 4294901760
    %1745 = vmatmul.mubr.f32.gmra.mrb[0].mxu0 %v1744
    %v1746 = vpop.f32.mrb[0].mxu0
    %v1747 = vadd.f32 %v1644, %v1746
    %v1748 = vpop.f32.mrb[0].mxu0
    %v1749 = vadd.f32 %v1646, %v1748
    %1750 = vdwg.mxu0
    %v1751 = vand.u32 %v28, 4294901760
    %1752 = vmatprep.subr.mxu0 %v1751
    %v1753 = vand.u32 %v27, 4294901760
    %1754 = vmatpush1.msra.mxu0 %v1753
    %v1755 = vand.u32 %v36, 4294901760
    %1756 = vmatprep.subr.mxu0 %v1755
    %v1757 = vand.u32 %v35, 4294901760
    %1758 = vmatpush1.msra.mxu0 %v1757
    %v1759 = vand.u32 %v44, 4294901760
    %1760 = vmatprep.subr.mxu0 %v1759
    %v1761 = vand.u32 %v43, 4294901760
    %1762 = vmatpush1.msra.mxu0 %v1761
    %v1763 = vand.u32 %v52, 4294901760
    %1764 = vmatprep.subr.mxu0 %v1763
    %v1765 = vand.u32 %v51, 4294901760
    %1766 = vmatpush1.msra.mxu0 %v1765
    %1767 = vmatprep.subr.mxu0 0.0
    %1768 = vmatpush1.msra.mxu0 0.0
    %1769 = vmatprep.subr.mxu0 0.0
    %1770 = vmatpush1.msra.mxu0 0.0
    %1771 = vmatprep.subr.mxu0 0.0
    %1772 = vmatpush1.msra.mxu0 0.0
    %1773 = vmatprep.subr.mxu0 0.0
    %1774 = vmatpush1.msra.mxu0 0.0
    %1775 = vmatprep.subr.mxu0 0.0
    %1776 = vmatpush1.msra.mxu0 0.0
    %1777 = vmatprep.subr.mxu0 0.0
    %1778 = vmatpush1.msra.mxu0 0.0
    %1779 = vmatprep.subr.mxu0 0.0
    %1780 = vmatpush1.msra.mxu0 0.0
    %1781 = vmatprep.subr.mxu0 0.0
    %1782 = vmatpush1.msra.mxu0 0.0
    %1783 = vmatprep.subr.mxu0 0.0
    %1784 = vmatpush1.msra.mxu0 0.0
    %1785 = vmatprep.subr.mxu0 0.0
    %1786 = vmatpush1.msra.mxu0 0.0
    %1787 = vmatprep.subr.mxu0 0.0
    %1788 = vmatpush1.msra.mxu0 0.0
    %1789 = vmatprep.subr.mxu0 0.0
    %1790 = vmatpush1.msra.mxu0 0.0
    %1791 = vmatprep.subr.mxu0 0.0
    %1792 = vmatpush1.msra.mxu0 0.0
    %1793 = vmatprep.subr.mxu0 0.0
    %1794 = vmatpush1.msra.mxu0 0.0
    %1795 = vmatprep.subr.mxu0 0.0
    %1796 = vmatpush1.msra.mxu0 0.0
    %1797 = vmatprep.subr.mxu0 0.0
    %1798 = vmatpush1.msra.mxu0 0.0
    %1799 = vmatprep.subr.mxu0 0.0
    %1800 = vmatpush1.msra.mxu0 0.0
    %1801 = vmatprep.subr.mxu0 0.0
    %1802 = vmatpush1.msra.mxu0 0.0
    %1803 = vmatprep.subr.mxu0 0.0
    %1804 = vmatpush1.msra.mxu0 0.0
    %1805 = vmatprep.subr.mxu0 0.0
    %1806 = vmatpush1.msra.mxu0 0.0
    %1807 = vmatprep.subr.mxu0 0.0
    %1808 = vmatpush1.msra.mxu0 0.0
    %1809 = vmatprep.subr.mxu0 0.0
    %1810 = vmatpush1.msra.mxu0 0.0
    %1811 = vmatprep.subr.mxu0 0.0
    %1812 = vmatpush1.msra.mxu0 0.0
    %1813 = vmatprep.subr.mxu0 0.0
    %1814 = vmatpush1.msra.mxu0 0.0
    %1815 = vmatprep.subr.mxu0 0.0
    %1816 = vmatpush1.msra.mxu0 0.0
    %1817 = vmatprep.subr.mxu0 0.0
    %1818 = vmatpush1.msra.mxu0 0.0
    %1819 = vmatprep.subr.mxu0 0.0
    %1820 = vmatpush1.msra.mxu0 0.0
    %1821 = vmatprep.subr.mxu0 0.0
    %1822 = vmatpush1.msra.mxu0 0.0
    %1823 = vmatprep.mubr.f32.mxu0 0.0
    %v1824 = vand.u32 %v57, 4294901760
    %1825 = vmatmul.mubr.f32.gmra.mrb[0].mxu0 %v1824
    %v1826 = vpop.f32.mrb[0].mxu0
    %v1827 = vadd.f32 %v1740, %v1826
    %v1828 = vpop.f32.mrb[0].mxu0
    %v1829 = vadd.f32 %v1742, %v1828
    %1830 = vmatprep.mubr.f32.mxu0 0.0
    %v1831 = vand.u32 %v60, 4294901760
    %1832 = vmatmul.mubr.f32.gmra.mrb[0].mxu0 %v1831
    %v1833 = vpop.f32.mrb[0].mxu0
    %v1834 = vadd.f32 %v1747, %v1833
    %v1835 = vpop.f32.mrb[0].mxu0
    %v1836 = vadd.f32 %v1749, %v1835
    %1837 = vdwg.mxu0
    %v1838 = vand.u32 %v30, 4294901760
    %1839 = vmatprep.subr.mxu0 %v1838
    %v1840 = vand.u32 %v29, 4294901760
    %1841 = vmatpush1.msra.mxu0 %v1840
    %v1842 = vand.u32 %v38, 4294901760
    %1843 = vmatprep.subr.mxu0 %v1842
    %v1844 = vand.u32 %v37, 4294901760
    %1845 = vmatpush1.msra.mxu0 %v1844
    %v1846 = vand.u32 %v46, 4294901760
    %1847 = vmatprep.subr.mxu0 %v1846
    %v1848 = vand.u32 %v45, 4294901760
    %1849 = vmatpush1.msra.mxu0 %v1848
    %v1850 = vand.u32 %v54, 4294901760
    %1851 = vmatprep.subr.mxu0 %v1850
    %v1852 = vand.u32 %v53, 4294901760
    %1853 = vmatpush1.msra.mxu0 %v1852
    %1854 = vmatprep.subr.mxu0 0.0
    %1855 = vmatpush1.msra.mxu0 0.0
    %1856 = vmatprep.subr.mxu0 0.0
    %1857 = vmatpush1.msra.mxu0 0.0
    %1858 = vmatprep.subr.mxu0 0.0
    %1859 = vmatpush1.msra.mxu0 0.0
    %1860 = vmatprep.subr.mxu0 0.0
    %1861 = vmatpush1.msra.mxu0 0.0
    %1862 = vmatprep.subr.mxu0 0.0
    %1863 = vmatpush1.msra.mxu0 0.0
    %1864 = vmatprep.subr.mxu0 0.0
    %1865 = vmatpush1.msra.mxu0 0.0
    %1866 = vmatprep.subr.mxu0 0.0
    %1867 = vmatpush1.msra.mxu0 0.0
    %1868 = vmatprep.subr.mxu0 0.0
    %1869 = vmatpush1.msra.mxu0 0.0
    %1870 = vmatprep.subr.mxu0 0.0
    %1871 = vmatpush1.msra.mxu0 0.0
    %1872 = vmatprep.subr.mxu0 0.0
    %1873 = vmatpush1.msra.mxu0 0.0
    %1874 = vmatprep.subr.mxu0 0.0
    %1875 = vmatpush1.msra.mxu0 0.0
    %1876 = vmatprep.subr.mxu0 0.0
    %1877 = vmatpush1.msra.mxu0 0.0
    %1878 = vmatprep.subr.mxu0 0.0
    %1879 = vmatpush1.msra.mxu0 0.0
    %1880 = vmatprep.subr.mxu0 0.0
    %1881 = vmatpush1.msra.mxu0 0.0
    %1882 = vmatprep.subr.mxu0 0.0
    %1883 = vmatpush1.msra.mxu0 0.0
    %1884 = vmatprep.subr.mxu0 0.0
    %1885 = vmatpush1.msra.mxu0 0.0
    %1886 = vmatprep.subr.mxu0 0.0
    %1887 = vmatpush1.msra.mxu0 0.0
    %1888 = vmatprep.subr.mxu0 0.0
    %1889 = vmatpush1.msra.mxu0 0.0
    %1890 = vmatprep.subr.mxu0 0.0
    %1891 = vmatpush1.msra.mxu0 0.0
    %1892 = vmatprep.subr.mxu0 0.0
    %1893 = vmatpush1.msra.mxu0 0.0
    %1894 = vmatprep.subr.mxu0 0.0
    %1895 = vmatpush1.msra.mxu0 0.0
    %1896 = vmatprep.subr.mxu0 0.0
    %1897 = vmatpush1.msra.mxu0 0.0
    %1898 = vmatprep.subr.mxu0 0.0
    %1899 = vmatpush1.msra.mxu0 0.0
    %1900 = vmatprep.subr.mxu0 0.0
    %1901 = vmatpush1.msra.mxu0 0.0
    %1902 = vmatprep.subr.mxu0 0.0
    %1903 = vmatpush1.msra.mxu0 0.0
    %1904 = vmatprep.subr.mxu0 0.0
    %1905 = vmatpush1.msra.mxu0 0.0
    %1906 = vmatprep.subr.mxu0 0.0
    %1907 = vmatpush1.msra.mxu0 0.0
    %1908 = vmatprep.subr.mxu0 0.0
    %1909 = vmatpush1.msra.mxu0 0.0
    %1910 = vmatprep.mubr.f32.mxu0 0.0
    %v1911 = vand.u32 %v57, 4294901760
    %v1912 = vsub.f32 %v57, %v1911
    %v1913 = vand.u32 %v1912, 4294901760
    %v1914 = vsub.f32 %v1912, %v1913
    %v1915 = vand.u32 %v1914, 4294901760
    %1916 = vmatmul.mubr.f32.gmra.mrb[0].mxu0 %v1915
    %v1917 = vpop.f32.mrb[0].mxu0
    %v1918 = vadd.f32 0.0, %v1917
    %v1919 = vpop.f32.mrb[0].mxu0
    %v1920 = vadd.f32 0.0, %v1919
    %1921 = vmatprep.mubr.f32.mxu0 0.0
    %v1922 = vand.u32 %v60, 4294901760
    %v1923 = vsub.f32 %v60, %v1922
    %v1924 = vand.u32 %v1923, 4294901760
    %v1925 = vsub.f32 %v1923, %v1924
    %v1926 = vand.u32 %v1925, 4294901760
    %1927 = vmatmul.mubr.f32.gmra.mrb[0].mxu0 %v1926
    %v1928 = vpop.f32.mrb[0].mxu0
    %v1929 = vadd.f32 0.0, %v1928
    %v1930 = vpop.f32.mrb[0].mxu0
    %v1931 = vadd.f32 0.0, %v1930
    %1932 = vdwg.mxu0
    %v1933 = vand.u32 %v30, 4294901760
    %v1934 = vsub.f32 %v30, %v1933
    %v1935 = vand.u32 %v1934, 4294901760
    %v1936 = vsub.f32 %v1934, %v1935
    %v1937 = vand.u32 %v1936, 4294901760
    %1938 = vmatprep.subr.mxu0 %v1937
    %v1939 = vand.u32 %v29, 4294901760
    %v1940 = vsub.f32 %v29, %v1939
    %v1941 = vand.u32 %v1940, 4294901760
    %v1942 = vsub.f32 %v1940, %v1941
    %v1943 = vand.u32 %v1942, 4294901760
    %1944 = vmatpush1.msra.mxu0 %v1943
    %v1945 = vand.u32 %v38, 4294901760
    %v1946 = vsub.f32 %v38, %v1945
    %v1947 = vand.u32 %v1946, 4294901760
    %v1948 = vsub.f32 %v1946, %v1947
    %v1949 = vand.u32 %v1948, 4294901760
    %1950 = vmatprep.subr.mxu0 %v1949
    %v1951 = vand.u32 %v37, 4294901760
    %v1952 = vsub.f32 %v37, %v1951
    %v1953 = vand.u32 %v1952, 4294901760
    %v1954 = vsub.f32 %v1952, %v1953
    %v1955 = vand.u32 %v1954, 4294901760
    %1956 = vmatpush1.msra.mxu0 %v1955
    %v1957 = vand.u32 %v46, 4294901760
    %v1958 = vsub.f32 %v46, %v1957
    %v1959 = vand.u32 %v1958, 4294901760
    %v1960 = vsub.f32 %v1958, %v1959
    %v1961 = vand.u32 %v1960, 4294901760
    %1962 = vmatprep.subr.mxu0 %v1961
    %v1963 = vand.u32 %v45, 4294901760
    %v1964 = vsub.f32 %v45, %v1963
    %v1965 = vand.u32 %v1964, 4294901760
    %v1966 = vsub.f32 %v1964, %v1965
    %v1967 = vand.u32 %v1966, 4294901760
    %1968 = vmatpush1.msra.mxu0 %v1967
    %v1969 = vand.u32 %v54, 4294901760
    %v1970 = vsub.f32 %v54, %v1969
    %v1971 = vand.u32 %v1970, 4294901760
    %v1972 = vsub.f32 %v1970, %v1971
    %v1973 = vand.u32 %v1972, 4294901760
    %1974 = vmatprep.subr.mxu0 %v1973
    %v1975 = vand.u32 %v53, 4294901760
    %v1976 = vsub.f32 %v53, %v1975
    %v1977 = vand.u32 %v1976, 4294901760
    %v1978 = vsub.f32 %v1976, %v1977
    %v1979 = vand.u32 %v1978, 4294901760
    %1980 = vmatpush1.msra.mxu0 %v1979
    %1981 = vmatprep.subr.mxu0 0.0
    %1982 = vmatpush1.msra.mxu0 0.0
    %1983 = vmatprep.subr.mxu0 0.0
    %1984 = vmatpush1.msra.mxu0 0.0
    %1985 = vmatprep.subr.mxu0 0.0
    %1986 = vmatpush1.msra.mxu0 0.0
    %1987 = vmatprep.subr.mxu0 0.0
    %1988 = vmatpush1.msra.mxu0 0.0
    %1989 = vmatprep.subr.mxu0 0.0
    %1990 = vmatpush1.msra.mxu0 0.0
    %1991 = vmatprep.subr.mxu0 0.0
    %1992 = vmatpush1.msra.mxu0 0.0
    %1993 = vmatprep.subr.mxu0 0.0
    %1994 = vmatpush1.msra.mxu0 0.0
    %1995 = vmatprep.subr.mxu0 0.0
    %1996 = vmatpush1.msra.mxu0 0.0
    %1997 = vmatprep.subr.mxu0 0.0
    %1998 = vmatpush1.msra.mxu0 0.0
    %1999 = vmatprep.subr.mxu0 0.0
    %2000 = vmatpush1.msra.mxu0 0.0
    %2001 = vmatprep.subr.mxu0 0.0
    %2002 = vmatpush1.msra.mxu0 0.0
    %2003 = vmatprep.subr.mxu0 0.0
    %2004 = vmatpush1.msra.mxu0 0.0
    %2005 = vmatprep.subr.mxu0 0.0
    %2006 = vmatpush1.msra.mxu0 0.0
    %2007 = vmatprep.subr.mxu0 0.0
    %2008 = vmatpush1.msra.mxu0 0.0
    %2009 = vmatprep.subr.mxu0 0.0
    %2010 = vmatpush1.msra.mxu0 0.0
    %2011 = vmatprep.subr.mxu0 0.0
    %2012 = vmatpush1.msra.mxu0 0.0
    %2013 = vmatprep.subr.mxu0 0.0
    %2014 = vmatpush1.msra.mxu0 0.0
    %2015 = vmatprep.subr.mxu0 0.0
    %2016 = vmatpush1.msra.mxu0 0.0
    %2017 = vmatprep.subr.mxu0 0.0
    %2018 = vmatpush1.msra.mxu0 0.0
    %2019 = vmatprep.subr.mxu0 0.0
    %2020 = vmatpush1.msra.mxu0 0.0
    %2021 = vmatprep.subr.mxu0 0.0
    %2022 = vmatpush1.msra.mxu0 0.0
    %2023 = vmatprep.subr.mxu0 0.0
    %2024 = vmatpush1.msra.mxu0 0.0
    %2025 = vmatprep.subr.mxu0 0.0
    %2026 = vmatpush1.msra.mxu0 0.0
    %2027 = vmatprep.subr.mxu0 0.0
    %2028 = vmatpush1.msra.mxu0 0.0
    %2029 = vmatprep.subr.mxu0 0.0
    %2030 = vmatpush1.msra.mxu0 0.0
    %2031 = vmatprep.subr.mxu0 0.0
    %2032 = vmatpush1.msra.mxu0 0.0
    %2033 = vmatprep.subr.mxu0 0.0
    %2034 = vmatpush1.msra.mxu0 0.0
    %2035 = vmatprep.subr.mxu0 0.0
    %2036 = vmatpush1.msra.mxu0 0.0
    %2037 = vmatprep.mubr.f32.mxu0 0.0
    %v2038 = vand.u32 %v57, 4294901760
    %2039 = vmatmul.mubr.f32.gmra.mrb[0].mxu0 %v2038
    %v2040 = vpop.f32.mrb[0].mxu0
    %v2041 = vadd.f32 %v1918, %v2040
    %v2042 = vpop.f32.mrb[0].mxu0
    %v2043 = vadd.f32 %v1920, %v2042
    %2044 = vmatprep.mubr.f32.mxu0 0.0
    %v2045 = vand.u32 %v60, 4294901760
    %2046 = vmatmul.mubr.f32.gmra.mrb[0].mxu0 %v2045
    %v2047 = vpop.f32.mrb[0].mxu0
    %v2048 = vadd.f32 %v1929, %v2047
    %v2049 = vpop.f32.mrb[0].mxu0
    %v2050 = vadd.f32 %v1931, %v2049
    %2051 = vdwg.mxu0
    %v2052 = vand.u32 %v30, 4294901760
    %v2053 = vsub.f32 %v30, %v2052
    %2054 = vmatprep.subr.mxu0 %v2053
    %v2055 = vand.u32 %v29, 4294901760
    %v2056 = vsub.f32 %v29, %v2055
    %2057 = vmatpush1.msra.mxu0 %v2056
    %v2058 = vand.u32 %v38, 4294901760
    %v2059 = vsub.f32 %v38, %v2058
    %2060 = vmatprep.subr.mxu0 %v2059
    %v2061 = vand.u32 %v37, 4294901760
    %v2062 = vsub.f32 %v37, %v2061
    %2063 = vmatpush1.msra.mxu0 %v2062
    %v2064 = vand.u32 %v46, 4294901760
    %v2065 = vsub.f32 %v46, %v2064
    %2066 = vmatprep.subr.mxu0 %v2065
    %v2067 = vand.u32 %v45, 4294901760
    %v2068 = vsub.f32 %v45, %v2067
    %2069 = vmatpush1.msra.mxu0 %v2068
    %v2070 = vand.u32 %v54, 4294901760
    %v2071 = vsub.f32 %v54, %v2070
    %2072 = vmatprep.subr.mxu0 %v2071
    %v2073 = vand.u32 %v53, 4294901760
    %v2074 = vsub.f32 %v53, %v2073
    %2075 = vmatpush1.msra.mxu0 %v2074
    %2076 = vmatprep.subr.mxu0 0.0
    %2077 = vmatpush1.msra.mxu0 0.0
    %2078 = vmatprep.subr.mxu0 0.0
    %2079 = vmatpush1.msra.mxu0 0.0
    %2080 = vmatprep.subr.mxu0 0.0
    %2081 = vmatpush1.msra.mxu0 0.0
    %2082 = vmatprep.subr.mxu0 0.0
    %2083 = vmatpush1.msra.mxu0 0.0
    %2084 = vmatprep.subr.mxu0 0.0
    %2085 = vmatpush1.msra.mxu0 0.0
    %2086 = vmatprep.subr.mxu0 0.0
    %2087 = vmatpush1.msra.mxu0 0.0
    %2088 = vmatprep.subr.mxu0 0.0
    %2089 = vmatpush1.msra.mxu0 0.0
    %2090 = vmatprep.subr.mxu0 0.0
    %2091 = vmatpush1.msra.mxu0 0.0
    %2092 = vmatprep.subr.mxu0 0.0
    %2093 = vmatpush1.msra.mxu0 0.0
    %2094 = vmatprep.subr.mxu0 0.0
    %2095 = vmatpush1.msra.mxu0 0.0
    %2096 = vmatprep.subr.mxu0 0.0
    %2097 = vmatpush1.msra.mxu0 0.0
    %2098 = vmatprep.subr.mxu0 0.0
    %2099 = vmatpush1.msra.mxu0 0.0
    %2100 = vmatprep.subr.mxu0 0.0
    %2101 = vmatpush1.msra.mxu0 0.0
    %2102 = vmatprep.subr.mxu0 0.0
    %2103 = vmatpush1.msra.mxu0 0.0
    %2104 = vmatprep.subr.mxu0 0.0
    %2105 = vmatpush1.msra.mxu0 0.0
    %2106 = vmatprep.subr.mxu0 0.0
    %2107 = vmatpush1.msra.mxu0 0.0
    %2108 = vmatprep.subr.mxu0 0.0
    %2109 = vmatpush1.msra.mxu0 0.0
    %2110 = vmatprep.subr.mxu0 0.0
    %2111 = vmatpush1.msra.mxu0 0.0
    %2112 = vmatprep.subr.mxu0 0.0
    %2113 = vmatpush1.msra.mxu0 0.0
    %2114 = vmatprep.subr.mxu0 0.0
    %2115 = vmatpush1.msra.mxu0 0.0
    %2116 = vmatprep.subr.mxu0 0.0
    %2117 = vmatpush1.msra.mxu0 0.0
    %2118 = vmatprep.subr.mxu0 0.0
    %2119 = vmatpush1.msra.mxu0 0.0
    %2120 = vmatprep.subr.mxu0 0.0
    %2121 = vmatpush1.msra.mxu0 0.0
    %2122 = vmatprep.subr.mxu0 0.0
    %2123 = vmatpush1.msra.mxu0 0.0
    %2124 = vmatprep.subr.mxu0 0.0
    %2125 = vmatpush1.msra.mxu0 0.0
    %2126 = vmatprep.subr.mxu0 0.0
    %2127 = vmatpush1.msra.mxu0 0.0
    %2128 = vmatprep.subr.mxu0 0.0
    %2129 = vmatpush1.msra.mxu0 0.0
    %2130 = vmatprep.subr.mxu0 0.0
    %2131 = vmatpush1.msra.mxu0 0.0
    %2132 = vmatprep.mubr.f32.mxu0 0.0
    %v2133 = vand.u32 %v57, 4294901760
    %v2134 = vsub.f32 %v57, %v2133
    %2135 = vmatmul.mubr.f32.gmra.mrb[0].mxu0 %v2134
    %v2136 = vpop.f32.mrb[0].mxu0
    %v2137 = vadd.f32 %v2041, %v2136
    %v2138 = vpop.f32.mrb[0].mxu0
    %v2139 = vadd.f32 %v2043, %v2138
    %2140 = vmatprep.mubr.f32.mxu0 0.0
    %v2141 = vand.u32 %v60, 4294901760
    %v2142 = vsub.f32 %v60, %v2141
    %2143 = vmatmul.mubr.f32.gmra.mrb[0].mxu0 %v2142
    %v2144 = vpop.f32.mrb[0].mxu0
    %v2145 = vadd.f32 %v2048, %v2144
    %v2146 = vpop.f32.mrb[0].mxu0
    %v2147 = vadd.f32 %v2050, %v2146
    %2148 = vdwg.mxu0
    %v2149 = vand.u32 %v30, 4294901760
    %2150 = vmatprep.subr.mxu0 %v2149
    %v2151 = vand.u32 %v29, 4294901760
    %2152 = vmatpush1.msra.mxu0 %v2151
    %v2153 = vand.u32 %v38, 4294901760
    %2154 = vmatprep.subr.mxu0 %v2153
    %v2155 = vand.u32 %v37, 4294901760
    %2156 = vmatpush1.msra.mxu0 %v2155
    %v2157 = vand.u32 %v46, 4294901760
    %2158 = vmatprep.subr.mxu0 %v2157
    %v2159 = vand.u32 %v45, 4294901760
    %2160 = vmatpush1.msra.mxu0 %v2159
    %v2161 = vand.u32 %v54, 4294901760
    %2162 = vmatprep.subr.mxu0 %v2161
    %v2163 = vand.u32 %v53, 4294901760
    %2164 = vmatpush1.msra.mxu0 %v2163
    %2165 = vmatprep.subr.mxu0 0.0
    %2166 = vmatpush1.msra.mxu0 0.0
    %2167 = vmatprep.subr.mxu0 0.0
    %2168 = vmatpush1.msra.mxu0 0.0
    %2169 = vmatprep.subr.mxu0 0.0
    %2170 = vmatpush1.msra.mxu0 0.0
    %2171 = vmatprep.subr.mxu0 0.0
    %2172 = vmatpush1.msra.mxu0 0.0
    %2173 = vmatprep.subr.mxu0 0.0
    %2174 = vmatpush1.msra.mxu0 0.0
    %2175 = vmatprep.subr.mxu0 0.0
    %2176 = vmatpush1.msra.mxu0 0.0
    %2177 = vmatprep.subr.mxu0 0.0
    %2178 = vmatpush1.msra.mxu0 0.0
    %2179 = vmatprep.subr.mxu0 0.0
    %2180 = vmatpush1.msra.mxu0 0.0
    %2181 = vmatprep.subr.mxu0 0.0
    %2182 = vmatpush1.msra.mxu0 0.0
    %2183 = vmatprep.subr.mxu0 0.0
    %2184 = vmatpush1.msra.mxu0 0.0
    %2185 = vmatprep.subr.mxu0 0.0
    %2186 = vmatpush1.msra.mxu0 0.0
    %2187 = vmatprep.subr.mxu0 0.0
    %2188 = vmatpush1.msra.mxu0 0.0
    %2189 = vmatprep.subr.mxu0 0.0
    %2190 = vmatpush1.msra.mxu0 0.0
    %2191 = vmatprep.subr.mxu0 0.0
    %2192 = vmatpush1.msra.mxu0 0.0
    %2193 = vmatprep.subr.mxu0 0.0
    %2194 = vmatpush1.msra.mxu0 0.0
    %2195 = vmatprep.subr.mxu0 0.0
    %2196 = vmatpush1.msra.mxu0 0.0
    %2197 = vmatprep.subr.mxu0 0.0
    %2198 = vmatpush1.msra.mxu0 0.0
    %2199 = vmatprep.subr.mxu0 0.0
    %2200 = vmatpush1.msra.mxu0 0.0
    %2201 = vmatprep.subr.mxu0 0.0
    %2202 = vmatpush1.msra.mxu0 0.0
    %2203 = vmatprep.subr.mxu0 0.0
    %2204 = vmatpush1.msra.mxu0 0.0
    %2205 = vmatprep.subr.mxu0 0.0
    %2206 = vmatpush1.msra.mxu0 0.0
    %2207 = vmatprep.subr.mxu0 0.0
    %2208 = vmatpush1.msra.mxu0 0.0
    %2209 = vmatprep.subr.mxu0 0.0
    %2210 = vmatpush1.msra.mxu0 0.0
    %2211 = vmatprep.subr.mxu0 0.0
    %2212 = vmatpush1.msra.mxu0 0.0
    %2213 = vmatprep.subr.mxu0 0.0
    %2214 = vmatpush1.msra.mxu0 0.0
    %2215 = vmatprep.subr.mxu0 0.0
    %2216 = vmatpush1.msra.mxu0 0.0
    %2217 = vmatprep.subr.mxu0 0.0
    %2218 = vmatpush1.msra.mxu0 0.0
    %2219 = vmatprep.subr.mxu0 0.0
    %2220 = vmatpush1.msra.mxu0 0.0
    %2221 = vmatprep.mubr.f32.mxu0 0.0
    %v2222 = vand.u32 %v57, 4294901760
    %v2223 = vsub.f32 %v57, %v2222
    %v2224 = vand.u32 %v2223, 4294901760
    %2225 = vmatmul.mubr.f32.gmra.mrb[0].mxu0 %v2224
    %v2226 = vpop.f32.mrb[0].mxu0
    %v2227 = vadd.f32 %v2137, %v2226
    %v2228 = vpop.f32.mrb[0].mxu0
    %v2229 = vadd.f32 %v2139, %v2228
    %2230 = vmatprep.mubr.f32.mxu0 0.0
    %v2231 = vand.u32 %v60, 4294901760
    %v2232 = vsub.f32 %v60, %v2231
    %v2233 = vand.u32 %v2232, 4294901760
    %2234 = vmatmul.mubr.f32.gmra.mrb[0].mxu0 %v2233
    %v2235 = vpop.f32.mrb[0].mxu0
    %v2236 = vadd.f32 %v2145, %v2235
    %v2237 = vpop.f32.mrb[0].mxu0
    %v2238 = vadd.f32 %v2147, %v2237
    %2239 = vdwg.mxu0
    %v2240 = vand.u32 %v30, 4294901760
    %v2241 = vsub.f32 %v30, %v2240
    %v2242 = vand.u32 %v2241, 4294901760
    %2243 = vmatprep.subr.mxu0 %v2242
    %v2244 = vand.u32 %v29, 4294901760
    %v2245 = vsub.f32 %v29, %v2244
    %v2246 = vand.u32 %v2245, 4294901760
    %2247 = vmatpush1.msra.mxu0 %v2246
    %v2248 = vand.u32 %v38, 4294901760
    %v2249 = vsub.f32 %v38, %v2248
    %v2250 = vand.u32 %v2249, 4294901760
    %2251 = vmatprep.subr.mxu0 %v2250
    %v2252 = vand.u32 %v37, 4294901760
    %v2253 = vsub.f32 %v37, %v2252
    %v2254 = vand.u32 %v2253, 4294901760
    %2255 = vmatpush1.msra.mxu0 %v2254
    %v2256 = vand.u32 %v46, 4294901760
    %v2257 = vsub.f32 %v46, %v2256
    %v2258 = vand.u32 %v2257, 4294901760
    %2259 = vmatprep.subr.mxu0 %v2258
    %v2260 = vand.u32 %v45, 4294901760
    %v2261 = vsub.f32 %v45, %v2260
    %v2262 = vand.u32 %v2261, 4294901760
    %2263 = vmatpush1.msra.mxu0 %v2262
    %v2264 = vand.u32 %v54, 4294901760
    %v2265 = vsub.f32 %v54, %v2264
    %v2266 = vand.u32 %v2265, 4294901760
    %2267 = vmatprep.subr.mxu0 %v2266
    %v2268 = vand.u32 %v53, 4294901760
    %v2269 = vsub.f32 %v53, %v2268
    %v2270 = vand.u32 %v2269, 4294901760
    %2271 = vmatpush1.msra.mxu0 %v2270
    %2272 = vmatprep.subr.mxu0 0.0
    %2273 = vmatpush1.msra.mxu0 0.0
    %2274 = vmatprep.subr.mxu0 0.0
    %2275 = vmatpush1.msra.mxu0 0.0
    %2276 = vmatprep.subr.mxu0 0.0
    %2277 = vmatpush1.msra.mxu0 0.0
    %2278 = vmatprep.subr.mxu0 0.0
    %2279 = vmatpush1.msra.mxu0 0.0
    %2280 = vmatprep.subr.mxu0 0.0
    %2281 = vmatpush1.msra.mxu0 0.0
    %2282 = vmatprep.subr.mxu0 0.0
    %2283 = vmatpush1.msra.mxu0 0.0
    %2284 = vmatprep.subr.mxu0 0.0
    %2285 = vmatpush1.msra.mxu0 0.0
    %2286 = vmatprep.subr.mxu0 0.0
    %2287 = vmatpush1.msra.mxu0 0.0
    %2288 = vmatprep.subr.mxu0 0.0
    %2289 = vmatpush1.msra.mxu0 0.0
    %2290 = vmatprep.subr.mxu0 0.0
    %2291 = vmatpush1.msra.mxu0 0.0
    %2292 = vmatprep.subr.mxu0 0.0
    %2293 = vmatpush1.msra.mxu0 0.0
    %2294 = vmatprep.subr.mxu0 0.0
    %2295 = vmatpush1.msra.mxu0 0.0
    %2296 = vmatprep.subr.mxu0 0.0
    %2297 = vmatpush1.msra.mxu0 0.0
    %2298 = vmatprep.subr.mxu0 0.0
    %2299 = vmatpush1.msra.mxu0 0.0
    %2300 = vmatprep.subr.mxu0 0.0
    %2301 = vmatpush1.msra.mxu0 0.0
    %2302 = vmatprep.subr.mxu0 0.0
    %2303 = vmatpush1.msra.mxu0 0.0
    %2304 = vmatprep.subr.mxu0 0.0
    %2305 = vmatpush1.msra.mxu0 0.0
    %2306 = vmatprep.subr.mxu0 0.0
    %2307 = vmatpush1.msra.mxu0 0.0
    %2308 = vmatprep.subr.mxu0 0.0
    %2309 = vmatpush1.msra.mxu0 0.0
    %2310 = vmatprep.subr.mxu0 0.0
    %2311 = vmatpush1.msra.mxu0 0.0
    %2312 = vmatprep.subr.mxu0 0.0
    %2313 = vmatpush1.msra.mxu0 0.0
    %2314 = vmatprep.subr.mxu0 0.0
    %2315 = vmatpush1.msra.mxu0 0.0
    %2316 = vmatprep.subr.mxu0 0.0
    %2317 = vmatpush1.msra.mxu0 0.0
    %2318 = vmatprep.subr.mxu0 0.0
    %2319 = vmatpush1.msra.mxu0 0.0
    %2320 = vmatprep.subr.mxu0 0.0
    %2321 = vmatpush1.msra.mxu0 0.0
    %2322 = vmatprep.subr.mxu0 0.0
    %2323 = vmatpush1.msra.mxu0 0.0
    %2324 = vmatprep.subr.mxu0 0.0
    %2325 = vmatpush1.msra.mxu0 0.0
    %2326 = vmatprep.subr.mxu0 0.0
    %2327 = vmatpush1.msra.mxu0 0.0
    %2328 = vmatprep.mubr.f32.mxu0 0.0
    %v2329 = vand.u32 %v57, 4294901760
    %2330 = vmatmul.mubr.f32.gmra.mrb[0].mxu0 %v2329
    %v2331 = vpop.f32.mrb[0].mxu0
    %v2332 = vadd.f32 %v2227, %v2331
    %v2333 = vpop.f32.mrb[0].mxu0
    %v2334 = vadd.f32 %v2229, %v2333
    %2335 = vmatprep.mubr.f32.mxu0 0.0
    %v2336 = vand.u32 %v60, 4294901760
    %2337 = vmatmul.mubr.f32.gmra.mrb[0].mxu0 %v2336
    %v2338 = vpop.f32.mrb[0].mxu0
    %v2339 = vadd.f32 %v2236, %v2338
    %v2340 = vpop.f32.mrb[0].mxu0
    %v2341 = vadd.f32 %v2238, %v2340
    %2342 = vdwg.mxu0
    %v2343 = vand.u32 %v30, 4294901760
    %2344 = vmatprep.subr.mxu0 %v2343
    %v2345 = vand.u32 %v29, 4294901760
    %2346 = vmatpush1.msra.mxu0 %v2345
    %v2347 = vand.u32 %v38, 4294901760
    %2348 = vmatprep.subr.mxu0 %v2347
    %v2349 = vand.u32 %v37, 4294901760
    %2350 = vmatpush1.msra.mxu0 %v2349
    %v2351 = vand.u32 %v46, 4294901760
    %2352 = vmatprep.subr.mxu0 %v2351
    %v2353 = vand.u32 %v45, 4294901760
    %2354 = vmatpush1.msra.mxu0 %v2353
    %v2355 = vand.u32 %v54, 4294901760
    %2356 = vmatprep.subr.mxu0 %v2355
    %v2357 = vand.u32 %v53, 4294901760
    %2358 = vmatpush1.msra.mxu0 %v2357
    %2359 = vmatprep.subr.mxu0 0.0
    %2360 = vmatpush1.msra.mxu0 0.0
    %2361 = vmatprep.subr.mxu0 0.0
    %2362 = vmatpush1.msra.mxu0 0.0
    %2363 = vmatprep.subr.mxu0 0.0
    %2364 = vmatpush1.msra.mxu0 0.0
    %2365 = vmatprep.subr.mxu0 0.0
    %2366 = vmatpush1.msra.mxu0 0.0
    %2367 = vmatprep.subr.mxu0 0.0
    %2368 = vmatpush1.msra.mxu0 0.0
    %2369 = vmatprep.subr.mxu0 0.0
    %2370 = vmatpush1.msra.mxu0 0.0
    %2371 = vmatprep.subr.mxu0 0.0
    %2372 = vmatpush1.msra.mxu0 0.0
    %2373 = vmatprep.subr.mxu0 0.0
    %2374 = vmatpush1.msra.mxu0 0.0
    %2375 = vmatprep.subr.mxu0 0.0
    %2376 = vmatpush1.msra.mxu0 0.0
    %2377 = vmatprep.subr.mxu0 0.0
    %2378 = vmatpush1.msra.mxu0 0.0
    %2379 = vmatprep.subr.mxu0 0.0
    %2380 = vmatpush1.msra.mxu0 0.0
    %2381 = vmatprep.subr.mxu0 0.0
    %2382 = vmatpush1.msra.mxu0 0.0
    %2383 = vmatprep.subr.mxu0 0.0
    %2384 = vmatpush1.msra.mxu0 0.0
    %2385 = vmatprep.subr.mxu0 0.0
    %2386 = vmatpush1.msra.mxu0 0.0
    %2387 = vmatprep.subr.mxu0 0.0
    %2388 = vmatpush1.msra.mxu0 0.0
    %2389 = vmatprep.subr.mxu0 0.0
    %2390 = vmatpush1.msra.mxu0 0.0
    %2391 = vmatprep.subr.mxu0 0.0
    %2392 = vmatpush1.msra.mxu0 0.0
    %2393 = vmatprep.subr.mxu0 0.0
    %2394 = vmatpush1.msra.mxu0 0.0
    %2395 = vmatprep.subr.mxu0 0.0
    %2396 = vmatpush1.msra.mxu0 0.0
    %2397 = vmatprep.subr.mxu0 0.0
    %2398 = vmatpush1.msra.mxu0 0.0
    %2399 = vmatprep.subr.mxu0 0.0
    %2400 = vmatpush1.msra.mxu0 0.0
    %2401 = vmatprep.subr.mxu0 0.0
    %2402 = vmatpush1.msra.mxu0 0.0
    %2403 = vmatprep.subr.mxu0 0.0
    %2404 = vmatpush1.msra.mxu0 0.0
    %2405 = vmatprep.subr.mxu0 0.0
    %2406 = vmatpush1.msra.mxu0 0.0
    %2407 = vmatprep.subr.mxu0 0.0
    %2408 = vmatpush1.msra.mxu0 0.0
    %2409 = vmatprep.subr.mxu0 0.0
    %2410 = vmatpush1.msra.mxu0 0.0
    %2411 = vmatprep.subr.mxu0 0.0
    %2412 = vmatpush1.msra.mxu0 0.0
    %2413 = vmatprep.subr.mxu0 0.0
    %2414 = vmatpush1.msra.mxu0 0.0
    %2415 = vmatprep.mubr.f32.mxu0 0.0
    %v2416 = vand.u32 %v57, 4294901760
    %2417 = vmatmul.mubr.f32.gmra.mrb[0].mxu0 %v2416
    %v2418 = vpop.f32.mrb[0].mxu0
    %v2419 = vadd.f32 %v2332, %v2418
    %v2420 = vpop.f32.mrb[0].mxu0
    %v2421 = vadd.f32 %v2334, %v2420
    %2422 = vmatprep.mubr.f32.mxu0 0.0
    %v2423 = vand.u32 %v60, 4294901760
    %2424 = vmatmul.mubr.f32.gmra.mrb[0].mxu0 %v2423
    %v2425 = vpop.f32.mrb[0].mxu0
    %v2426 = vadd.f32 %v2339, %v2425
    %v2427 = vpop.f32.mrb[0].mxu0
    %v2428 = vadd.f32 %v2341, %v2427
    %2429 = vdwg.mxu0
    %2430 = vst [vmem:[%s3] sm:$0xff] %v643
    %2431 = vst [vmem:[%s3 + $0x8] sm:$0xff] %v645
    %2432 = vst [vmem:[%s3 + $0x10] sm:$0xff] %v1235
    %2433 = vst [vmem:[%s3 + $0x18] sm:$0xff] %v1237
    %2434 = vst [vmem:[%s3 + $0x20] sm:$0xff] %v1827
    %2435 = vst [vmem:[%s3 + $0x28] sm:$0xff] %v1829
    %2436 = vst [vmem:[%s3 + $0x30] sm:$0xff] %v2419
    %2437 = vst [vmem:[%s3 + $0x38] sm:$0xff] %v2421
    %2438 = vst [vmem:[%s3 + $0x40] sm:$0xff] %v650
    %2439 = vst [vmem:[%s3 + $0x48] sm:$0xff] %v652
    %2440 = vst [vmem:[%s3 + $0x50] sm:$0xff] %v1242
    %2441 = vst [vmem:[%s3 + $0x58] sm:$0xff] %v1244
    %2442 = vst [vmem:[%s3 + $0x60] sm:$0xff] %v1834
    %2443 = vst [vmem:[%s3 + $0x68] sm:$0xff] %v1836
    %2444 = vst [vmem:[%s3 + $0x70] sm:$0xff] %v2426
    %2445 = vst [vmem:[%s3 + $0x78] sm:$0xff] %v2428
    %v2446 = vld [vmem:[%s2] sm:$0x1]
    %v2448 = vlaneseq
    %v2449 = vshrl.u32 %v2448, 7
    %v2450 = vsub.s32 0, %v2449
    %v2451 = vrot.slane %v2446, %v2450
    %v2453 = vmul.f32 %v21, %v2451
    %v2454 = vmul.f32 %v22, %v2451
    %2455 = vst.msk [vmem:[#allocation2] sm:$0xff] %vm55, %v2453
    %2456 = vst.msk [vmem:[#allocation2 + $0x8] sm:$0xff] %vm55, %v2454
    // Predicated region
    $region14: #{_binary_embedding_impl.1} parent=1 // pred_check
      _
    $region15: #{_binary_embedding_impl.1} parent=1 // pred_check_branch
      %2458 = sbr.rel (0) target = $region17
    $region16: #{_binary_embedding_impl.1} parent=1 // pred_region
      _
    $region17: #{_binary_embedding_impl.1} parent=1 // pred_fallthru
      _
    // Predicated region
    $region18: #{_binary_embedding_impl.1} parent=1 // pred_check
      _
    $region19: #{_binary_embedding_impl.1} parent=1 // pred_check_branch
      %2460 = sbr.rel (0) target = $region21
    $region20: #{_binary_embedding_impl.1} parent=1 // pred_region
      %s2462 = ssub.s32 256, 256
      %2463 = vsyncadd [#allocation3], %s2462
      %s2464 = sshll.u32 [#allocation2], 4
      %s2465 = int_to_ptr.vmem [resolvable:$true] %s2464
      %2470 = dma.vmem_to_hbm [thread:$0]  %s2465, 256, %s4, [#allocation3], 128, 128, 8
    $region21: #{_binary_embedding_impl.1} parent=1 // pred_fallthru
      _
    // Predicated region
    $region22: #{_binary_embedding_impl.1} parent=1 // pred_check
      _
    $region23: #{_binary_embedding_impl.1} parent=1 // pred_check_branch
      %2472 = sbr.rel (0) target = $region25
    $region24: #{_binary_embedding_impl.1} parent=1 // pred_region
      _
    $region25: #{_binary_embedding_impl.1} parent=1 // pred_fallthru
      _
    // Predicated region
    $region26: #{_binary_embedding_impl.1} parent=1 // pred_check
      _
    $region27: #{_binary_embedding_impl.1} parent=1 // pred_check_branch
      %2474 = sbr.rel (0) target = $region29
    $region28: #{_binary_embedding_impl.1} parent=1 // pred_region
      %2475 = dma.done [#allocation3], 256
    $region29: #{_binary_embedding_impl.1} parent=1 // pred_fallthru
      _
    %2476 = vsyncpa [#allocation3], 1

</llo_original>
